<compile_context>
chip_gen: v6e
topology: v6e:2x2x1
jax: 0.10.0
libtpu: 0.0.40
codegen_flags: <defaults>
</compile_context>

<pallas_src>
import functools

import jax
import jax.numpy as jnp
from jax.experimental import pallas as pl
from jax.experimental.pallas import tpu as pltpu


def _segmenthead_kernel(x_ref, xt_ref, xb_ref, s1_ref, b1_ref, w1_ref,
                        b2_ref, w2_ref, bias2_ref, o_ref,
                        *, TH, W, Cin, Cmid, Cout):
    """One (batch, row-strip) tile per grid step.

    x_ref    : (1, Cin, TH*W)   input strip (channels in sublanes, rows*W in lanes)
    xt_ref   : (1, 1, Cin, W)   row above the strip (garbage at image top; masked)
    xb_ref   : (1, 1, Cin, W)   row below the strip (garbage at image bottom; masked)
    s1,b1    : (Cin, 1)         folded BN1 scale / shift
    w1_ref   : (9, Cmid, Cin)   3x3 conv weights, tap-major, BN2-scale folded, bf16
    b2       : (Cmid, 1)        folded BN2 shift
    w2_ref   : (Cout, Cmid)     1x1 conv weights, bf16
    bias2    : (Cout, 1)        1x1 conv bias
    o_ref    : (1, Cout, TH*W)  output strip (lane-dense stores)
    """
    TW = TH * W
    r = pl.program_id(1)
    n_strips = pl.num_programs(1)

    s1 = s1_ref[...]                                     # (Cin, 1)
    b1 = b1_ref[...]

    # ---- BN1 + ReLU on the strip and its halo rows (f32, VPU) ---------------
    a = jnp.maximum(x_ref[0] * s1 + b1, 0.0)             # (Cin, TW)
    top = jnp.maximum(xt_ref[0, 0] * s1 + b1, 0.0)       # (Cin, W)
    bot = jnp.maximum(xb_ref[0, 0] * s1 + b1, 0.0)       # (Cin, W)
    # conv1's padding=1 zero-pads the *activation*: halo rows outside the
    # image must contribute 0 (not relu(bn1(0))).
    top = top * (r > 0).astype(jnp.float32)
    bot = bot * (r < n_strips - 1).astype(jnp.float32)

    # ---- column masks, built once per strip at (1, TW) ----------------------
    pos = jax.lax.broadcasted_iota(jnp.int32, (1, TW), 1)
    if (W & (W - 1)) == 0:
        col = jnp.bitwise_and(pos, W - 1)                # x = pos % W (W pow2)
    else:
        col = jax.lax.rem(pos, W)
    col_lo = col >= 1              # valid when reading column x-1
    col_hi = col < (W - 1)         # valid when reading column x+1

    # ---- vertical taps: strip shifted by one row, halo fills the boundary ---
    if TW > W:
        tap_up = jnp.concatenate([top, a[:, :TW - W]], axis=1)   # value at row y-1
        tap_dn = jnp.concatenate([a[:, W:], bot], axis=1)        # value at row y+1
    else:                                                        # TH == 1
        tap_up, tap_dn = top, bot

    # ---- conv1: 9 accumulated MXU dots with K=Cin (no im2col scratch) -------
    acc = jnp.zeros((Cmid, TW), jnp.float32)
    for t, tap_v in enumerate((tap_up, a, tap_dn)):      # ky = 0, 1, 2
        for ox in (-1, 0, 1):                            # kx = 0, 1, 2
            if ox == 0:
                sh = tap_v
            else:
                # np.roll semantics: out[p] = tap_v[(p - shift) mod TW]
                sh = pltpu.roll(tap_v, shift=(-ox) % TW, axis=1)
                mask = col_lo if ox == -1 else col_hi
                sh = jnp.where(mask, sh, 0.0)
            wk = w1_ref[t * 3 + (ox + 1)]                # (Cmid, Cin) bf16
            acc = acc + jnp.dot(wk, sh.astype(jnp.bfloat16),
                                preferred_element_type=jnp.float32)

    # ---- BN2 shift (scale folded into w1) + ReLU -----------------------------
    y = jnp.maximum(acc + b2_ref[...], 0.0)              # (Cmid, TW) f32

    # ---- 1x1 conv + bias (MXU) ------------------------------------------------
    out = jnp.dot(w2_ref[...], y.astype(jnp.bfloat16),
                  preferred_element_type=jnp.float32) + bias2_ref[...]
    o_ref[0] = out.astype(o_ref.dtype)


def _pick_tile_rows(H, W, Cin, Cmid, Cout, budget_bytes=12 * 2 ** 20):
    """Largest row-tile TH (divisor of H, TH*W lane-dense) whose per-step
    working set fits the budget, preferring >= 2 strips for pipelining /
    megacore sharding."""
    def est_bytes(th):
        tw = th * W
        return (2 * Cin * tw * 4          # x strip, double-buffered
                + 2 * Cout * tw * 4       # output strip, double-buffered
                + Cmid * tw * 4           # conv1 f32 accumulator
                + 4 * Cin * tw * 4        # activation + live tap values (rough)
                + 4 * Cin * W * 4         # halo rows, double-buffered
                + 2 * (9 * Cmid * Cin + Cout * Cmid) * 2)   # bf16 weights

    cands = [th for th in range(1, H + 1)
             if H % th == 0
             and ((th * W) % 128 == 0 or th == H)
             and est_bytes(th) <= budget_bytes]
    multi = [th for th in cands if H // th >= 2]
    if multi:
        return max(multi)
    if cands:
        return max(cands)
    return H


def segmenthead_forward(x_nchw, params, scale_factor=None):
    """x_nchw: (N, Cin, H, W) float32. Returns (N, Cout, H', W')."""
    (gamma1, beta1, mean1, var1, w1,
     gamma2, beta2, mean2, var2, w2, bias2) = params
    eps = 1e-5

    N, Cin, H, W = x_nchw.shape
    Cmid = w1.shape[0]              # (Cmid, Cin, 3, 3) PyTorch layout
    Cout = w2.shape[0]              # (Cout, Cmid, 1, 1)
    HW = H * W

    TH = _pick_tile_rows(H, W, Cin, Cmid, Cout)
    R = H // TH
    TW = TH * W

    # fold BN (inference) into per-channel scale / shift
    s1 = gamma1 / jnp.sqrt(var1 + eps)
    b1 = beta1 - mean1 * s1
    s2 = gamma2 / jnp.sqrt(var2 + eps)
    b2 = beta2 - mean2 * s2

    # conv1 weights: (Cmid, Cin, 3, 3) -> (3, 3, Cmid, Cin) -> (9, Cmid, Cin),
    # tap-major (ky*3+kx), BN2 scale folded per output channel, bf16 operands.
    w1_k = (jnp.transpose(w1, (2, 3, 0, 1)) * s2[None, None, :, None]) \
        .reshape(9, Cmid, Cin).astype(jnp.bfloat16)
    # conv2: (Cout, Cmid, 1, 1) -> (Cout, Cmid) bf16
    w2_k = w2[:, :, 0, 0].astype(jnp.bfloat16)

    x_f32 = x_nchw.astype(jnp.float32)
    x_flat = x_f32.reshape(N, Cin, HW)                  # free reshape, no transpose

    # 1-row halos per strip (row above / below).  Border values are unused —
    # they are masked inside the kernel based on the strip index.
    top_idx = jnp.clip(jnp.arange(R) * TH - 1, 0, H - 1)
    bot_idx = jnp.clip(jnp.arange(R) * TH + TH, 0, H - 1)
    x_top = jnp.transpose(jnp.take(x_f32, top_idx, axis=2), (0, 2, 1, 3))  # (N,R,Cin,W)
    x_bot = jnp.transpose(jnp.take(x_f32, bot_idx, axis=2), (0, 2, 1, 3))  # (N,R,Cin,W)

    kern = functools.partial(_segmenthead_kernel,
                             TH=TH, W=W, Cin=Cin, Cmid=Cmid, Cout=Cout)

    # explicit scoped-VMEM limit derived from the chosen tile (headroom, but
    # kept below v7x's 64 MiB physical VMEM)
    est = (2 * Cin * TW * 4 + 2 * Cout * TW * 4 + Cmid * TW * 4
           + 4 * Cin * TW * 4 + 4 * Cin * W * 4
           + 2 * (9 * Cmid * Cin + Cout * Cmid) * 2)
    vmem_limit = int(min(max(3 * est, 32 * 2 ** 20), 48 * 2 ** 20))

    out_flat = pl.pallas_call(
        kern,
        out_shape=jax.ShapeDtypeStruct((N, Cout, HW), jnp.float32),
        grid_spec=pltpu.PrefetchScalarGridSpec(
            num_scalar_prefetch=0,
            grid=(N, R),
            in_specs=[
                pl.BlockSpec((1, Cin, TW), lambda n, r: (n, 0, r)),
                pl.BlockSpec((1, 1, Cin, W), lambda n, r: (n, r, 0, 0)),
                pl.BlockSpec((1, 1, Cin, W), lambda n, r: (n, r, 0, 0)),
                pl.BlockSpec((Cin, 1), lambda n, r: (0, 0)),
                pl.BlockSpec((Cin, 1), lambda n, r: (0, 0)),
                pl.BlockSpec((9, Cmid, Cin), lambda n, r: (0, 0, 0)),
                pl.BlockSpec((Cmid, 1), lambda n, r: (0, 0)),
                pl.BlockSpec((Cout, Cmid), lambda n, r: (0, 0)),
                pl.BlockSpec((Cout, 1), lambda n, r: (0, 0)),
            ],
            out_specs=pl.BlockSpec((1, Cout, TW), lambda n, r: (n, 0, r)),
        ),
        compiler_params=pltpu.CompilerParams(
            dimension_semantics=("parallel", "parallel"),
            vmem_limit_bytes=vmem_limit),
    )(x_flat, x_top, x_bot,
      s1.reshape(Cin, 1).astype(jnp.float32),
      b1.reshape(Cin, 1).astype(jnp.float32),
      w1_k,
      b2.reshape(Cmid, 1).astype(jnp.float32),
      w2_k,
      bias2.reshape(Cout, 1).astype(jnp.float32))

    out = out_flat.reshape(N, Cout, H, W)

    if scale_factor is not None:
        # glue: F.interpolate(mode='bilinear', align_corners=False) ==
        # half-pixel bilinear, which jax.image.resize implements.
        new_h, new_w = H * scale_factor, W * scale_factor
        out = jax.image.resize(out, (N, Cout, new_h, new_w), method="bilinear")
    return out


def segmenthead_reference(x, params):
    """Pure-JAX (XLA) reference of the same inference-mode forward pass."""
    (g1, be1, m1, v1, w1, g2, be2, m2, v2, w2, bias2) = params
    eps = 1e-5

    def bn(z, g, be, m, v):
        return (z - m[None, :, None, None]) / jnp.sqrt(v[None, :, None, None] + eps) \
               * g[None, :, None, None] + be[None, :, None, None]

    h = jnp.maximum(bn(x, g1, be1, m1, v1), 0.0)
    h = jax.lax.conv_general_dilated(
        h, w1, window_strides=(1, 1), padding=((1, 1), (1, 1)),
        dimension_numbers=("NCHW", "OIHW", "NCHW"),
        precision=jax.lax.Precision.HIGHEST)
    h = jnp.maximum(bn(h, g2, be2, m2, v2), 0.0)
    out = jax.lax.conv_general_dilated(
        h, w2, window_strides=(1, 1), padding=((0, 0), (0, 0)),
        dimension_numbers=("NCHW", "OIHW", "NCHW"),
        precision=jax.lax.Precision.HIGHEST)
    return out + bias2[None, :, None, None]


def init_params(key, inplanes, interplanes, outplanes):
    ks = jax.random.split(key, 8)
    gamma1 = jax.random.uniform(ks[0], (inplanes,), jnp.float32, 0.5, 1.5)
    beta1 = jax.random.normal(ks[1], (inplanes,), jnp.float32) * 0.1
    mean1 = jax.random.normal(ks[2], (inplanes,), jnp.float32) * 0.1
    var1 = jax.random.uniform(ks[3], (inplanes,), jnp.float32, 0.5, 1.5)
    w1 = jax.random.normal(ks[4], (interplanes, inplanes, 3, 3), jnp.float32) * 0.1
    gamma2 = jax.random.uniform(ks[5], (interplanes,), jnp.float32, 0.5, 1.5)
    beta2 = jax.random.normal(ks[6], (interplanes,), jnp.float32) * 0.1
    mean2 = jnp.zeros((interplanes,), jnp.float32)
    var2 = jnp.ones((interplanes,), jnp.float32)
    w2 = jax.random.normal(ks[7], (outplanes, interplanes, 1, 1), jnp.float32) * 0.1
    bias2 = jnp.linspace(-0.1, 0.1, outplanes).astype(jnp.float32)
    return (gamma1, beta1, mean1, var1, w1,
            gamma2, beta2, mean2, var2, w2, bias2)


if __name__ == "__main__":
    N, Cin, H, W = 2, 4, 16, 16
    Cmid, Cout = 32, 8

    key = jax.random.PRNGKey(0)
    kx, kp = jax.random.split(key)
    x = jax.random.normal(kx, (N, Cin, H, W), jnp.float32)
    params = init_params(kp, Cin, Cmid, Cout)

    out = segmenthead_forward(x, params, scale_factor=None)
    jax.block_until_ready(out)
    assert out.shape == (N, Cout, H, W), out.shape

    # numerical check against a pure-JAX reference (bf16 MXU operands with
    # f32 accumulation -> slightly looser tolerance than pure f32)
    ref = segmenthead_reference(x, params)
    jax.block_until_ready(ref)
    max_err = float(jnp.max(jnp.abs(out - ref)))
    assert max_err < 3e-2, f"max abs err {max_err}"

    # also exercise the optional upsample path (glue, outside the kernel)
    out_up = segmenthead_forward(x, params, scale_factor=2)
    jax.block_until_ready(out_up)
    assert out_up.shape == (N, Cout, 2 * H, 2 * W), out_up.shape

    print("KERNEL_OK")
</pallas_src>

<mosaic_0001>
module attributes {stable_mosaic.version = 11 : i64} {
  func.func @_segmenthead_kernel(%arg0: i32, %arg1: i32, %arg2: memref<1x4x128xf32, #tpu.memory_space<vmem>>, %arg3: memref<1x1x4x16xf32, #tpu.memory_space<vmem>>, %arg4: memref<1x1x4x16xf32, #tpu.memory_space<vmem>>, %arg5: memref<4x1xf32, #tpu.memory_space<vmem>>, %arg6: memref<4x1xf32, #tpu.memory_space<vmem>>, %arg7: memref<9x32x4xbf16, #tpu.memory_space<vmem>>, %arg8: memref<32x1xf32, #tpu.memory_space<vmem>>, %arg9: memref<8x32xbf16, #tpu.memory_space<vmem>>, %arg10: memref<8x1xf32, #tpu.memory_space<vmem>>, %arg11: memref<1x8x128xf32, #tpu.memory_space<vmem>>) attributes {dimension_semantics = [#tpu.dimension_semantics<parallel>, #tpu.dimension_semantics<parallel>], iteration_bounds = array<i64: 2, 2>, scalar_prefetch = 0 : i64, scratch_operands = 0 : i64, tpu.core_type = #tpu.core_type<tc>, window_params = [{transform_indices = @transform_0, window_bounds = array<i64: 1, 4, 128>}, {transform_indices = @transform_1, window_bounds = array<i64: 1, 1, 4, 16>}, {transform_indices = @transform_2, window_bounds = array<i64: 1, 1, 4, 16>}, {pipeline_mode = #tpu.pipeline_mode<synchronous>, transform_indices = @transform_3, window_bounds = array<i64: 4, 1>}, {pipeline_mode = #tpu.pipeline_mode<synchronous>, transform_indices = @transform_4, window_bounds = array<i64: 4, 1>}, {pipeline_mode = #tpu.pipeline_mode<synchronous>, transform_indices = @transform_5, window_bounds = array<i64: 9, 32, 4>}, {pipeline_mode = #tpu.pipeline_mode<synchronous>, transform_indices = @transform_6, window_bounds = array<i64: 32, 1>}, {pipeline_mode = #tpu.pipeline_mode<synchronous>, transform_indices = @transform_7, window_bounds = array<i64: 8, 32>}, {pipeline_mode = #tpu.pipeline_mode<synchronous>, transform_indices = @transform_8, window_bounds = array<i64: 8, 1>}, {transform_indices = @transform_9, window_bounds = array<i64: 1, 8, 128>}]} {
    %c0 = arith.constant 0 : index
    %c0_0 = arith.constant 0 : index
    %0 = vector.load %arg5[%c0, %c0_0] : memref<4x1xf32, #tpu.memory_space<vmem>>, vector<4x1xf32>
    %c0_1 = arith.constant 0 : index
    %c0_2 = arith.constant 0 : index
    %1 = vector.load %arg6[%c0_1, %c0_2] : memref<4x1xf32, #tpu.memory_space<vmem>>, vector<4x1xf32>
    %c0_3 = arith.constant 0 : index
    %c0_4 = arith.constant 0 : index
    %c0_5 = arith.constant 0 : index
    %2 = vector.load %arg2[%c0_3, %c0_4, %c0_5] : memref<1x4x128xf32, #tpu.memory_space<vmem>>, vector<1x4x128xf32>
    %3 = vector.shape_cast %2 : vector<1x4x128xf32> to vector<4x128xf32>
    %4 = vector.broadcast %0 : vector<4x1xf32> to vector<4x128xf32>
    %5 = arith.mulf %3, %4 : vector<4x128xf32>
    %6 = vector.broadcast %1 : vector<4x1xf32> to vector<4x128xf32>
    %7 = arith.addf %5, %6 : vector<4x128xf32>
    %cst = arith.constant 0.000000e+00 : f32
    %8 = vector.broadcast %cst : f32 to vector<4x128xf32>
    %9 = arith.maximumf %7, %8 : vector<4x128xf32>
    %c0_6 = arith.constant 0 : index
    %c0_7 = arith.constant 0 : index
    %c0_8 = arith.constant 0 : index
    %c0_9 = arith.constant 0 : index
    %10 = vector.load %arg3[%c0_6, %c0_7, %c0_8, %c0_9] : memref<1x1x4x16xf32, #tpu.memory_space<vmem>>, vector<1x1x4x16xf32>
    %11 = vector.shape_cast %10 : vector<1x1x4x16xf32> to vector<4x16xf32>
    %12 = vector.broadcast %0 : vector<4x1xf32> to vector<4x16xf32>
    %13 = arith.mulf %11, %12 : vector<4x16xf32>
    %14 = vector.broadcast %1 : vector<4x1xf32> to vector<4x16xf32>
    %15 = arith.addf %13, %14 : vector<4x16xf32>
    %cst_10 = arith.constant 0.000000e+00 : f32
    %16 = vector.broadcast %cst_10 : f32 to vector<4x16xf32>
    %17 = arith.maximumf %15, %16 : vector<4x16xf32>
    %c0_11 = arith.constant 0 : index
    %c0_12 = arith.constant 0 : index
    %c0_13 = arith.constant 0 : index
    %c0_14 = arith.constant 0 : index
    %18 = vector.load %arg4[%c0_11, %c0_12, %c0_13, %c0_14] : memref<1x1x4x16xf32, #tpu.memory_space<vmem>>, vector<1x1x4x16xf32>
    %19 = vector.shape_cast %18 : vector<1x1x4x16xf32> to vector<4x16xf32>
    %20 = vector.broadcast %0 : vector<4x1xf32> to vector<4x16xf32>
    %21 = arith.mulf %19, %20 : vector<4x16xf32>
    %22 = vector.broadcast %1 : vector<4x1xf32> to vector<4x16xf32>
    %23 = arith.addf %21, %22 : vector<4x16xf32>
    %cst_15 = arith.constant 0.000000e+00 : f32
    %24 = vector.broadcast %cst_15 : f32 to vector<4x16xf32>
    %25 = arith.maximumf %23, %24 : vector<4x16xf32>
    %c0_i32 = arith.constant 0 : i32
    %26 = arith.cmpi sgt, %arg1, %c0_i32 : i32
    %27 = arith.extui %26 : i1 to i32
    %28 = arith.sitofp %27 : i32 to f32
    %29 = vector.broadcast %28 : f32 to vector<4x16xf32>
    %30 = arith.mulf %17, %29 : vector<4x16xf32>
    %c1_i32 = arith.constant 1 : i32
    %31 = arith.cmpi slt, %arg1, %c1_i32 : i32
    %32 = arith.extui %31 : i1 to i32
    %33 = arith.sitofp %32 : i32 to f32
    %34 = vector.broadcast %33 : f32 to vector<4x16xf32>
    %35 = arith.mulf %25, %34 : vector<4x16xf32>
    %36 = tpu.iota {dimensions = array<i32: 1>} : vector<1x128xi32>
    %c15_i32 = arith.constant 15 : i32
    %37 = vector.broadcast %c15_i32 : i32 to vector<1x128xi32>
    %38 = arith.andi %36, %37 : vector<1x128xi32>
    %c1_i32_16 = arith.constant 1 : i32
    %39 = vector.broadcast %c1_i32_16 : i32 to vector<1x128xi32>
    %40 = arith.cmpi sge, %38, %39 : vector<1x128xi32>
    %c15_i32_17 = arith.constant 15 : i32
    %41 = vector.broadcast %c15_i32_17 : i32 to vector<1x128xi32>
    %42 = arith.cmpi slt, %38, %41 : vector<1x128xi32>
    %43 = vector.extract_strided_slice %9 {offsets = [0, 0], sizes = [4, 112], strides = [1, 1]} : vector<4x128xf32> to vector<4x112xf32>
    %44 = tpu.concatenate %30, %43 in 1 : vector<4x16xf32>, vector<4x112xf32> -> vector<4x128xf32>
    %45 = vector.extract_strided_slice %9 {offsets = [0, 16], sizes = [4, 112], strides = [1, 1]} : vector<4x128xf32> to vector<4x112xf32>
    %46 = tpu.concatenate %45, %35 in 1 : vector<4x112xf32>, vector<4x16xf32> -> vector<4x128xf32>
    %cst_18 = arith.constant 0.000000e+00 : f32
    %47 = vector.broadcast %cst_18 : f32 to vector<32x128xf32>
    %c1_i32_19 = arith.constant 1 : i32
    %48 = tpu.dynamic_rotate %44 by %c1_i32_19 dim 1 : vector<4x128xf32>, i32 -> vector<4x128xf32>
    %cst_20 = arith.constant 0.000000e+00 : f32
    %49 = vector.shape_cast %40 : vector<1x128xi1> to vector<1x128xi1>
    %50 = vector.broadcast %49 : vector<1x128xi1> to vector<4x128xi1>
    %51 = vector.broadcast %cst_20 : f32 to vector<4x128xf32>
    %52 = arith.select %50, %48, %51 : vector<4x128xi1>, vector<4x128xf32>
    %c0_21 = arith.constant 0 : index
    %c0_22 = arith.constant 0 : index
    %c0_23 = arith.constant 0 : index
    %53 = vector.load %arg7[%c0_21, %c0_22, %c0_23] : memref<9x32x4xbf16, #tpu.memory_space<vmem>>, vector<1x32x4xbf16>
    %54 = vector.shape_cast %53 : vector<1x32x4xbf16> to vector<32x4xbf16>
    %55 = arith.truncf %52 : vector<4x128xf32> to vector<4x128xbf16>
    %cst_24 = arith.constant dense<0.000000e+00> : vector<32x128xf32>
    %56 = tpu.matmul %54, %55, %cst_24 {dimension_numbers = #tpu.dot_dimension_numbers<[1], [0], [0], [1], [0, 0, 1, 1], [], []>} : vector<32x4xbf16>, vector<4x128xbf16>, vector<32x128xf32> -> vector<32x128xf32>
    %57 = arith.addf %47, %56 : vector<32x128xf32>
    %c1 = arith.constant 1 : index
    %c0_25 = arith.constant 0 : index
    %c0_26 = arith.constant 0 : index
    %58 = vector.load %arg7[%c1, %c0_25, %c0_26] : memref<9x32x4xbf16, #tpu.memory_space<vmem>>, vector<1x32x4xbf16>
    %59 = vector.shape_cast %58 : vector<1x32x4xbf16> to vector<32x4xbf16>
    %60 = arith.truncf %44 : vector<4x128xf32> to vector<4x128xbf16>
    %cst_27 = arith.constant dense<0.000000e+00> : vector<32x128xf32>
    %61 = tpu.matmul %59, %60, %cst_27 {dimension_numbers = #tpu.dot_dimension_numbers<[1], [0], [0], [1], [0, 0, 1, 1], [], []>} : vector<32x4xbf16>, vector<4x128xbf16>, vector<32x128xf32> -> vector<32x128xf32>
    %62 = arith.addf %57, %61 : vector<32x128xf32>
    %c127_i32 = arith.constant 127 : i32
    %63 = tpu.dynamic_rotate %44 by %c127_i32 dim 1 : vector<4x128xf32>, i32 -> vector<4x128xf32>
    %cst_28 = arith.constant 0.000000e+00 : f32
    %64 = vector.shape_cast %42 : vector<1x128xi1> to vector<1x128xi1>
    %65 = vector.broadcast %64 : vector<1x128xi1> to vector<4x128xi1>
    %66 = vector.broadcast %cst_28 : f32 to vector<4x128xf32>
    %67 = arith.select %65, %63, %66 : vector<4x128xi1>, vector<4x128xf32>
    %c2 = arith.constant 2 : index
    %c0_29 = arith.constant 0 : index
    %c0_30 = arith.constant 0 : index
    %68 = vector.load %arg7[%c2, %c0_29, %c0_30] : memref<9x32x4xbf16, #tpu.memory_space<vmem>>, vector<1x32x4xbf16>
    %69 = vector.shape_cast %68 : vector<1x32x4xbf16> to vector<32x4xbf16>
    %70 = arith.truncf %67 : vector<4x128xf32> to vector<4x128xbf16>
    %cst_31 = arith.constant dense<0.000000e+00> : vector<32x128xf32>
    %71 = tpu.matmul %69, %70, %cst_31 {dimension_numbers = #tpu.dot_dimension_numbers<[1], [0], [0], [1], [0, 0, 1, 1], [], []>} : vector<32x4xbf16>, vector<4x128xbf16>, vector<32x128xf32> -> vector<32x128xf32>
    %72 = arith.addf %62, %71 : vector<32x128xf32>
    %c1_i32_32 = arith.constant 1 : i32
    %73 = tpu.dynamic_rotate %9 by %c1_i32_32 dim 1 : vector<4x128xf32>, i32 -> vector<4x128xf32>
    %cst_33 = arith.constant 0.000000e+00 : f32
    %74 = vector.shape_cast %40 : vector<1x128xi1> to vector<1x128xi1>
    %75 = vector.broadcast %74 : vector<1x128xi1> to vector<4x128xi1>
    %76 = vector.broadcast %cst_33 : f32 to vector<4x128xf32>
    %77 = arith.select %75, %73, %76 : vector<4x128xi1>, vector<4x128xf32>
    %c3 = arith.constant 3 : index
    %c0_34 = arith.constant 0 : index
    %c0_35 = arith.constant 0 : index
    %78 = vector.load %arg7[%c3, %c0_34, %c0_35] : memref<9x32x4xbf16, #tpu.memory_space<vmem>>, vector<1x32x4xbf16>
    %79 = vector.shape_cast %78 : vector<1x32x4xbf16> to vector<32x4xbf16>
    %80 = arith.truncf %77 : vector<4x128xf32> to vector<4x128xbf16>
    %cst_36 = arith.constant dense<0.000000e+00> : vector<32x128xf32>
    %81 = tpu.matmul %79, %80, %cst_36 {dimension_numbers = #tpu.dot_dimension_numbers<[1], [0], [0], [1], [0, 0, 1, 1], [], []>} : vector<32x4xbf16>, vector<4x128xbf16>, vector<32x128xf32> -> vector<32x128xf32>
    %82 = arith.addf %72, %81 : vector<32x128xf32>
    %c4 = arith.constant 4 : index
    %c0_37 = arith.constant 0 : index
    %c0_38 = arith.constant 0 : index
    %83 = vector.load %arg7[%c4, %c0_37, %c0_38] : memref<9x32x4xbf16, #tpu.memory_space<vmem>>, vector<1x32x4xbf16>
    %84 = vector.shape_cast %83 : vector<1x32x4xbf16> to vector<32x4xbf16>
    %85 = arith.truncf %9 : vector<4x128xf32> to vector<4x128xbf16>
    %cst_39 = arith.constant dense<0.000000e+00> : vector<32x128xf32>
    %86 = tpu.matmul %84, %85, %cst_39 {dimension_numbers = #tpu.dot_dimension_numbers<[1], [0], [0], [1], [0, 0, 1, 1], [], []>} : vector<32x4xbf16>, vector<4x128xbf16>, vector<32x128xf32> -> vector<32x128xf32>
    %87 = arith.addf %82, %86 : vector<32x128xf32>
    %c127_i32_40 = arith.constant 127 : i32
    %88 = tpu.dynamic_rotate %9 by %c127_i32_40 dim 1 : vector<4x128xf32>, i32 -> vector<4x128xf32>
    %cst_41 = arith.constant 0.000000e+00 : f32
    %89 = vector.shape_cast %42 : vector<1x128xi1> to vector<1x128xi1>
    %90 = vector.broadcast %89 : vector<1x128xi1> to vector<4x128xi1>
    %91 = vector.broadcast %cst_41 : f32 to vector<4x128xf32>
    %92 = arith.select %90, %88, %91 : vector<4x128xi1>, vector<4x128xf32>
    %c5 = arith.constant 5 : index
    %c0_42 = arith.constant 0 : index
    %c0_43 = arith.constant 0 : index
    %93 = vector.load %arg7[%c5, %c0_42, %c0_43] : memref<9x32x4xbf16, #tpu.memory_space<vmem>>, vector<1x32x4xbf16>
    %94 = vector.shape_cast %93 : vector<1x32x4xbf16> to vector<32x4xbf16>
    %95 = arith.truncf %92 : vector<4x128xf32> to vector<4x128xbf16>
    %cst_44 = arith.constant dense<0.000000e+00> : vector<32x128xf32>
    %96 = tpu.matmul %94, %95, %cst_44 {dimension_numbers = #tpu.dot_dimension_numbers<[1], [0], [0], [1], [0, 0, 1, 1], [], []>} : vector<32x4xbf16>, vector<4x128xbf16>, vector<32x128xf32> -> vector<32x128xf32>
    %97 = arith.addf %87, %96 : vector<32x128xf32>
    %c1_i32_45 = arith.constant 1 : i32
    %98 = tpu.dynamic_rotate %46 by %c1_i32_45 dim 1 : vector<4x128xf32>, i32 -> vector<4x128xf32>
    %cst_46 = arith.constant 0.000000e+00 : f32
    %99 = vector.shape_cast %40 : vector<1x128xi1> to vector<1x128xi1>
    %100 = vector.broadcast %99 : vector<1x128xi1> to vector<4x128xi1>
    %101 = vector.broadcast %cst_46 : f32 to vector<4x128xf32>
    %102 = arith.select %100, %98, %101 : vector<4x128xi1>, vector<4x128xf32>
    %c6 = arith.constant 6 : index
    %c0_47 = arith.constant 0 : index
    %c0_48 = arith.constant 0 : index
    %103 = vector.load %arg7[%c6, %c0_47, %c0_48] : memref<9x32x4xbf16, #tpu.memory_space<vmem>>, vector<1x32x4xbf16>
    %104 = vector.shape_cast %103 : vector<1x32x4xbf16> to vector<32x4xbf16>
    %105 = arith.truncf %102 : vector<4x128xf32> to vector<4x128xbf16>
    %cst_49 = arith.constant dense<0.000000e+00> : vector<32x128xf32>
    %106 = tpu.matmul %104, %105, %cst_49 {dimension_numbers = #tpu.dot_dimension_numbers<[1], [0], [0], [1], [0, 0, 1, 1], [], []>} : vector<32x4xbf16>, vector<4x128xbf16>, vector<32x128xf32> -> vector<32x128xf32>
    %107 = arith.addf %97, %106 : vector<32x128xf32>
    %c7 = arith.constant 7 : index
    %c0_50 = arith.constant 0 : index
    %c0_51 = arith.constant 0 : index
    %108 = vector.load %arg7[%c7, %c0_50, %c0_51] : memref<9x32x4xbf16, #tpu.memory_space<vmem>>, vector<1x32x4xbf16>
    %109 = vector.shape_cast %108 : vector<1x32x4xbf16> to vector<32x4xbf16>
    %110 = arith.truncf %46 : vector<4x128xf32> to vector<4x128xbf16>
    %cst_52 = arith.constant dense<0.000000e+00> : vector<32x128xf32>
    %111 = tpu.matmul %109, %110, %cst_52 {dimension_numbers = #tpu.dot_dimension_numbers<[1], [0], [0], [1], [0, 0, 1, 1], [], []>} : vector<32x4xbf16>, vector<4x128xbf16>, vector<32x128xf32> -> vector<32x128xf32>
    %112 = arith.addf %107, %111 : vector<32x128xf32>
    %c127_i32_53 = arith.constant 127 : i32
    %113 = tpu.dynamic_rotate %46 by %c127_i32_53 dim 1 : vector<4x128xf32>, i32 -> vector<4x128xf32>
    %cst_54 = arith.constant 0.000000e+00 : f32
    %114 = vector.shape_cast %42 : vector<1x128xi1> to vector<1x128xi1>
    %115 = vector.broadcast %114 : vector<1x128xi1> to vector<4x128xi1>
    %116 = vector.broadcast %cst_54 : f32 to vector<4x128xf32>
    %117 = arith.select %115, %113, %116 : vector<4x128xi1>, vector<4x128xf32>
    %c8 = arith.constant 8 : index
    %c0_55 = arith.constant 0 : index
    %c0_56 = arith.constant 0 : index
    %118 = vector.load %arg7[%c8, %c0_55, %c0_56] : memref<9x32x4xbf16, #tpu.memory_space<vmem>>, vector<1x32x4xbf16>
    %119 = vector.shape_cast %118 : vector<1x32x4xbf16> to vector<32x4xbf16>
    %120 = arith.truncf %117 : vector<4x128xf32> to vector<4x128xbf16>
    %cst_57 = arith.constant dense<0.000000e+00> : vector<32x128xf32>
    %121 = tpu.matmul %119, %120, %cst_57 {dimension_numbers = #tpu.dot_dimension_numbers<[1], [0], [0], [1], [0, 0, 1, 1], [], []>} : vector<32x4xbf16>, vector<4x128xbf16>, vector<32x128xf32> -> vector<32x128xf32>
    %122 = arith.addf %112, %121 : vector<32x128xf32>
    %c0_58 = arith.constant 0 : index
    %c0_59 = arith.constant 0 : index
    %123 = vector.load %arg8[%c0_58, %c0_59] : memref<32x1xf32, #tpu.memory_space<vmem>>, vector<32x1xf32>
    %124 = vector.broadcast %123 : vector<32x1xf32> to vector<32x128xf32>
    %125 = arith.addf %122, %124 : vector<32x128xf32>
    %cst_60 = arith.constant 0.000000e+00 : f32
    %126 = vector.broadcast %cst_60 : f32 to vector<32x128xf32>
    %127 = arith.maximumf %125, %126 : vector<32x128xf32>
    %c0_61 = arith.constant 0 : index
    %c0_62 = arith.constant 0 : index
    %128 = vector.load %arg9[%c0_61, %c0_62] : memref<8x32xbf16, #tpu.memory_space<vmem>>, vector<8x32xbf16>
    %129 = arith.truncf %127 : vector<32x128xf32> to vector<32x128xbf16>
    %cst_63 = arith.constant dense<0.000000e+00> : vector<8x128xf32>
    %130 = tpu.matmul %128, %129, %cst_63 {dimension_numbers = #tpu.dot_dimension_numbers<[1], [0], [0], [1], [0, 0, 1, 1], [], []>} : vector<8x32xbf16>, vector<32x128xbf16>, vector<8x128xf32> -> vector<8x128xf32>
    %c0_64 = arith.constant 0 : index
    %c0_65 = arith.constant 0 : index
    %131 = vector.load %arg10[%c0_64, %c0_65] : memref<8x1xf32, #tpu.memory_space<vmem>>, vector<8x1xf32>
    %132 = vector.broadcast %131 : vector<8x1xf32> to vector<8x128xf32>
    %133 = arith.addf %130, %132 : vector<8x128xf32>
    %c0_66 = arith.constant 0 : index
    %c0_67 = arith.constant 0 : index
    %c0_68 = arith.constant 0 : index
    %134 = vector.load %arg11[%c0_66, %c0_67, %c0_68] : memref<1x8x128xf32, #tpu.memory_space<vmem>>, vector<1x8x128xf32>
    %135 = vector.shape_cast %134 : vector<1x8x128xf32> to vector<8x128xf32>
    %136 = vector.shape_cast %133 : vector<8x128xf32> to vector<1x8x128xf32>
    tpu.vector_store %arg11[%c0_66, %c0_67, %c0_68], %136 {strides = array<i32>} : memref<1x8x128xf32, #tpu.memory_space<vmem>>, vector<1x8x128xf32>,
    return
  }
  func.func @transform_0(%arg0: i32, %arg1: i32) -> (i32, i32, i32) {
    %c0_i32 = arith.constant 0 : i32
    %c0_i32_0 = arith.constant 0 : i32
    return %arg0, %c0_i32, %arg1 : i32, i32, i32
  }
  func.func @transform_1(%arg0: i32, %arg1: i32) -> (i32, i32, i32, i32) {
    %c0_i32 = arith.constant 0 : i32
    %c0_i32_0 = arith.constant 0 : i32
    %c0_i32_1 = arith.constant 0 : i32
    return %arg0, %arg1, %c0_i32, %c0_i32_0 : i32, i32, i32, i32
  }
  func.func @transform_2(%arg0: i32, %arg1: i32) -> (i32, i32, i32, i32) {
    %c0_i32 = arith.constant 0 : i32
    %c0_i32_0 = arith.constant 0 : i32
    %c0_i32_1 = arith.constant 0 : i32
    return %arg0, %arg1, %c0_i32, %c0_i32_0 : i32, i32, i32, i32
  }
  func.func @transform_3(%arg0: i32, %arg1: i32) -> (i32, i32) {
    %c0_i32 = arith.constant 0 : i32
    %c0_i32_0 = arith.constant 0 : i32
    %c0_i32_1 = arith.constant 0 : i32
    return %c0_i32, %c0_i32_0 : i32, i32
  }
  func.func @transform_4(%arg0: i32, %arg1: i32) -> (i32, i32) {
    %c0_i32 = arith.constant 0 : i32
    %c0_i32_0 = arith.constant 0 : i32
    %c0_i32_1 = arith.constant 0 : i32
    return %c0_i32, %c0_i32_0 : i32, i32
  }
  func.func @transform_5(%arg0: i32, %arg1: i32) -> (i32, i32, i32) {
    %c0_i32 = arith.constant 0 : i32
    %c0_i32_0 = arith.constant 0 : i32
    %c0_i32_1 = arith.constant 0 : i32
    %c0_i32_2 = arith.constant 0 : i32
    return %c0_i32, %c0_i32_0, %c0_i32_1 : i32, i32, i32
  }
  func.func @transform_6(%arg0: i32, %arg1: i32) -> (i32, i32) {
    %c0_i32 = arith.constant 0 : i32
    %c0_i32_0 = arith.constant 0 : i32
    %c0_i32_1 = arith.constant 0 : i32
    return %c0_i32, %c0_i32_0 : i32, i32
  }
  func.func @transform_7(%arg0: i32, %arg1: i32) -> (i32, i32) {
    %c0_i32 = arith.constant 0 : i32
    %c0_i32_0 = arith.constant 0 : i32
    %c0_i32_1 = arith.constant 0 : i32
    return %c0_i32, %c0_i32_0 : i32, i32
  }
  func.func @transform_8(%arg0: i32, %arg1: i32) -> (i32, i32) {
    %c0_i32 = arith.constant 0 : i32
    %c0_i32_0 = arith.constant 0 : i32
    %c0_i32_1 = arith.constant 0 : i32
    return %c0_i32, %c0_i32_0 : i32, i32
  }
  func.func @transform_9(%arg0: i32, %arg1: i32) -> (i32, i32, i32) {
    %c0_i32 = arith.constant 0 : i32
    %c0_i32_0 = arith.constant 0 : i32
    return %arg0, %c0_i32, %arg1 : i32, i32, i32
  }
}

</mosaic_0001>

<llo_original>
// kernel: tpu_custom_call.1
$region0: #{tpu_custom_call.1}
  #allocation0 [shape = 'u32[]', space=smem, size = 0x4, offset = 0x4, fixed_abs, tag = 'smem constant byte address 0x4 - core index']
  #allocation1 [shape = 'u32[144,128]{1,0:T(1,128)}', space=vmem, size = 0x12000, scoped, tag = 'internal scratch']
  %s0 = inlined_call_operand.vmem [shape: f32[2,4,256], index: 0, kind: input, shape index: {}]
  %s1 = inlined_call_operand.vmem [shape: f32[2,2,4,16], index: 1, kind: input, shape index: {}]
  %s2 = inlined_call_operand.vmem [shape: f32[2,2,4,16], index: 2, kind: input, shape index: {}]
  %s3 = inlined_call_operand.vmem [shape: f32[4,1], index: 3, kind: input, shape index: {}]
  %s4 = inlined_call_operand.vmem [shape: f32[4,1], index: 4, kind: input, shape index: {}]
  %s5 = inlined_call_operand.vmem [shape: bf16[9,32,4], index: 5, kind: input, shape index: {}]
  %s6 = inlined_call_operand.vmem [shape: f32[32,1], index: 6, kind: input, shape index: {}]
  %s7 = inlined_call_operand.vmem [shape: bf16[8,32], index: 7, kind: input, shape index: {}]
  %s8 = inlined_call_operand.vmem [shape: f32[8,1], index: 8, kind: input, shape index: {}]
  %s9 = inlined_call_operand.hbm [shape: f32[2,8,256], index: 9, kind: output, shape index: {}]
  %s10 = sld [smem:[#allocation0]]
  $region69: #{tpu_custom_call.1} parent=0
    _
  %s12 = ssub.s32 1, %s10
  %s13 = scalar_select 0, %s12, %s10
  $region1: #{tpu_custom_call.1} parent=0
    #allocation2 [shape = 'u8[8192]{0}', space=vmem, size = 0x2000, scoped, tag = 'output window, operand 0']
    #allocation3 [shape = 's32[2]{0}', space=sflag, size = 0x8, scoped, tag = 'scoped memory for tpu_custom_call.1']
    %14 = vsyncpa [#allocation3], 0
    %s15 = scalar_lea.sflag [#allocation3], 1
    %16 = vsyncpa %s15, 0
    loop: start=0, step=1, limit=6
    $region2: #{tpu_custom_call.1} parent=1 // loop_pre_header
      _
    $region3: #{tpu_custom_call.1} parent=1 // loop_header
      %s18 = sphi 0, %s22
      %p19 = scmp.ge.s32.totalorder %s18, 6
      %s25 = sphi 0, %s37
      %s26 = sphi 0, %s33
      %s27 = sphi 0, %s25
      %s28 = sphi 0, %s26
      %s29 = sphi 0, %s27
      %s30 = sphi 0, %s28
      %s42 = sphi 0, %s44
      %s45 = sphi 0, %s42
      %s46 = sphi 0, %s45
      %s62 = sphi 0, %s46
      %s70 = sphi 0, %s72
      %s73 = sphi 0, %s70
      %s74 = sphi 0, %s73
      %s90 = sphi 0, %s74
      %s98 = sphi 0, %s100
      %s101 = sphi 0, %s98
      %s102 = sphi 0, %s101
      %s118 = sphi 0, %s102
      %s122 = sphi 0, %s122
      %s124 = sphi 0, %s122
      %s125 = sphi 0, %s124
      %s139 = sphi 0, %s125
      %s143 = sphi 0, %s143
      %s145 = sphi 0, %s143
      %s146 = sphi 0, %s145
      %s160 = sphi 0, %s146
      %s164 = sphi 0, %s164
      %s166 = sphi 0, %s164
      %s167 = sphi 0, %s166
      %s181 = sphi 0, %s167
      %s185 = sphi 0, %s185
      %s187 = sphi 0, %s185
      %s188 = sphi 0, %s187
      %s202 = sphi 0, %s188
      %s206 = sphi 0, %s206
      %s208 = sphi 0, %s206
      %s209 = sphi 0, %s208
      %s223 = sphi 0, %s209
      %s227 = sphi 0, %s227
      %s229 = sphi 0, %s227
      %s230 = sphi 0, %s229
      %s244 = sphi 0, %s230
      %s252 = sphi 0, %s254
      %s255 = sphi 0, %s252
      %s256 = sphi 0, %s255
      %s272 = sphi 0, %s256
    $region4: #{tpu_custom_call.1} parent=1 // loop_header_branch
      %21 = sbr.rel (%p19) target = $region8
    $region5: #{tpu_custom_call.1} parent=1 // loop_body
      %s23 = ssub.s32 %s18, 1
      %s24 = ssub.s32 %s18, 2
      %s31 = sadd.s32 1, %s26
      %p32 = scmp.ge.s32.totalorder %s31, 2
      %s33 = scalar_select %p32, 0, %s31
      %s34 = sadd.s32 1, %s25
      %s35 = scalar_select %p32, %s34, %s25
      %p36 = scmp.ge.s32.totalorder %s35, 2
      %s37 = scalar_select %p36, 0, %s35
      %s38 = ssub.s32 %s25, %s37
      %s39 = ssub.s32 %s26, %s33
      %s40 = sor.u32 %s38, %s39
      %p41 = scmp.eq.s32.totalorder %s40, 0
      %s43 = sadd.s32 %s42, 1
      %s44 = scalar_select %p41, %s42, %s43
      %p47 = pneg %p41
      %p48 = scmp.eq.s32.totalorder %s18, 3
      %p49 = por %p47, %p48
      %p50 = scmp.ne.s32.totalorder %s42, %s45
      %p51 = scmp.eq.s32.totalorder %s18, 0
      %p52 = por %p50, %p51
      %p53 = scmp.ne.s32.totalorder %s42, %s45
      %p54 = scmp.eq.s32.totalorder %s23, 3
      %p55 = por %p53, %p54
      %p56 = scmp.ne.s32.totalorder %s45, %s46
      %p57 = scmp.eq.s32.totalorder %s23, 0
      %p58 = por %p56, %p57
      %p59 = scmp.ne.s32.totalorder %s45, %s46
      %p60 = scmp.eq.s32.totalorder %s24, 3
      %p61 = por %p59, %p60
      %p63 = scmp.ne.s32.totalorder %s46, %s62
      %p64 = scmp.eq.s32.totalorder %s24, 0
      %p65 = por %p63, %p64
      %s66 = ssub.s32 %s25, %s37
      %s67 = ssub.s32 %s26, %s33
      %s68 = sor.u32 %s66, %s67
      %p69 = scmp.eq.s32.totalorder %s68, 0
      %s71 = sadd.s32 %s70, 1
      %s72 = scalar_select %p69, %s70, %s71
      %p75 = pneg %p69
      %p76 = scmp.eq.s32.totalorder %s18, 3
      %p77 = por %p75, %p76
      %p78 = scmp.ne.s32.totalorder %s70, %s73
      %p79 = scmp.eq.s32.totalorder %s18, 0
      %p80 = por %p78, %p79
      %p81 = scmp.ne.s32.totalorder %s70, %s73
      %p82 = scmp.eq.s32.totalorder %s23, 3
      %p83 = por %p81, %p82
      %p84 = scmp.ne.s32.totalorder %s73, %s74
      %p85 = scmp.eq.s32.totalorder %s23, 0
      %p86 = por %p84, %p85
      %p87 = scmp.ne.s32.totalorder %s73, %s74
      %p88 = scmp.eq.s32.totalorder %s24, 3
      %p89 = por %p87, %p88
      %p91 = scmp.ne.s32.totalorder %s74, %s90
      %p92 = scmp.eq.s32.totalorder %s24, 0
      %p93 = por %p91, %p92
      %s94 = ssub.s32 %s25, %s37
      %s95 = ssub.s32 %s26, %s33
      %s96 = sor.u32 %s94, %s95
      %p97 = scmp.eq.s32.totalorder %s96, 0
      %s99 = sadd.s32 %s98, 1
      %s100 = scalar_select %p97, %s98, %s99
      %p103 = pneg %p97
      %p104 = scmp.eq.s32.totalorder %s18, 3
      %p105 = por %p103, %p104
      %p106 = scmp.ne.s32.totalorder %s98, %s101
      %p107 = scmp.eq.s32.totalorder %s18, 0
      %p108 = por %p106, %p107
      %p109 = scmp.ne.s32.totalorder %s98, %s101
      %p110 = scmp.eq.s32.totalorder %s23, 3
      %p111 = por %p109, %p110
      %p112 = scmp.ne.s32.totalorder %s101, %s102
      %p113 = scmp.eq.s32.totalorder %s23, 0
      %p114 = por %p112, %p113
      %p115 = scmp.ne.s32.totalorder %s101, %s102
      %p116 = scmp.eq.s32.totalorder %s24, 3
      %p117 = por %p115, %p116
      %p119 = scmp.ne.s32.totalorder %s102, %s118
      %p120 = scmp.eq.s32.totalorder %s24, 0
      %p121 = por %p119, %p120
      %s123 = sadd.s32 %s122, 1
      %p126 = scmp.eq.s32.totalorder %s18, 3
      %p127 = scmp.ne.s32.totalorder %s122, %s124
      %p128 = scmp.eq.s32.totalorder %s18, 0
      %p129 = por %p127, %p128
      %p130 = scmp.ne.s32.totalorder %s122, %s124
      %p131 = scmp.eq.s32.totalorder %s23, 3
      %p132 = por %p130, %p131
      %p133 = scmp.ne.s32.totalorder %s124, %s125
      %p134 = scmp.eq.s32.totalorder %s23, 0
      %p135 = por %p133, %p134
      %p136 = scmp.ne.s32.totalorder %s124, %s125
      %p137 = scmp.eq.s32.totalorder %s24, 3
      %p138 = por %p136, %p137
      %p140 = scmp.ne.s32.totalorder %s125, %s139
      %p141 = scmp.eq.s32.totalorder %s24, 0
      %p142 = por %p140, %p141
      %s144 = sadd.s32 %s143, 1
      %p147 = scmp.eq.s32.totalorder %s18, 3
      %p148 = scmp.ne.s32.totalorder %s143, %s145
      %p149 = scmp.eq.s32.totalorder %s18, 0
      %p150 = por %p148, %p149
      %p151 = scmp.ne.s32.totalorder %s143, %s145
      %p152 = scmp.eq.s32.totalorder %s23, 3
      %p153 = por %p151, %p152
      %p154 = scmp.ne.s32.totalorder %s145, %s146
      %p155 = scmp.eq.s32.totalorder %s23, 0
      %p156 = por %p154, %p155
      %p157 = scmp.ne.s32.totalorder %s145, %s146
      %p158 = scmp.eq.s32.totalorder %s24, 3
      %p159 = por %p157, %p158
      %p161 = scmp.ne.s32.totalorder %s146, %s160
      %p162 = scmp.eq.s32.totalorder %s24, 0
      %p163 = por %p161, %p162
      %s165 = sadd.s32 %s164, 1
      %p168 = scmp.eq.s32.totalorder %s18, 3
      %p169 = scmp.ne.s32.totalorder %s164, %s166
      %p170 = scmp.eq.s32.totalorder %s18, 0
      %p171 = por %p169, %p170
      %p172 = scmp.ne.s32.totalorder %s164, %s166
      %p173 = scmp.eq.s32.totalorder %s23, 3
      %p174 = por %p172, %p173
      %p175 = scmp.ne.s32.totalorder %s166, %s167
      %p176 = scmp.eq.s32.totalorder %s23, 0
      %p177 = por %p175, %p176
      %p178 = scmp.ne.s32.totalorder %s166, %s167
      %p179 = scmp.eq.s32.totalorder %s24, 3
      %p180 = por %p178, %p179
      %p182 = scmp.ne.s32.totalorder %s167, %s181
      %p183 = scmp.eq.s32.totalorder %s24, 0
      %p184 = por %p182, %p183
      %s186 = sadd.s32 %s185, 1
      %p189 = scmp.eq.s32.totalorder %s18, 3
      %p190 = scmp.ne.s32.totalorder %s185, %s187
      %p191 = scmp.eq.s32.totalorder %s18, 0
      %p192 = por %p190, %p191
      %p193 = scmp.ne.s32.totalorder %s185, %s187
      %p194 = scmp.eq.s32.totalorder %s23, 3
      %p195 = por %p193, %p194
      %p196 = scmp.ne.s32.totalorder %s187, %s188
      %p197 = scmp.eq.s32.totalorder %s23, 0
      %p198 = por %p196, %p197
      %p199 = scmp.ne.s32.totalorder %s187, %s188
      %p200 = scmp.eq.s32.totalorder %s24, 3
      %p201 = por %p199, %p200
      %p203 = scmp.ne.s32.totalorder %s188, %s202
      %p204 = scmp.eq.s32.totalorder %s24, 0
      %p205 = por %p203, %p204
      %s207 = sadd.s32 %s206, 1
      %p210 = scmp.eq.s32.totalorder %s18, 3
      %p211 = scmp.ne.s32.totalorder %s206, %s208
      %p212 = scmp.eq.s32.totalorder %s18, 0
      %p213 = por %p211, %p212
      %p214 = scmp.ne.s32.totalorder %s206, %s208
      %p215 = scmp.eq.s32.totalorder %s23, 3
      %p216 = por %p214, %p215
      %p217 = scmp.ne.s32.totalorder %s208, %s209
      %p218 = scmp.eq.s32.totalorder %s23, 0
      %p219 = por %p217, %p218
      %p220 = scmp.ne.s32.totalorder %s208, %s209
      %p221 = scmp.eq.s32.totalorder %s24, 3
      %p222 = por %p220, %p221
      %p224 = scmp.ne.s32.totalorder %s209, %s223
      %p225 = scmp.eq.s32.totalorder %s24, 0
      %p226 = por %p224, %p225
      %s228 = sadd.s32 %s227, 1
      %p231 = scmp.eq.s32.totalorder %s18, 3
      %p232 = scmp.ne.s32.totalorder %s227, %s229
      %p233 = scmp.eq.s32.totalorder %s18, 0
      %p234 = por %p232, %p233
      %p235 = scmp.ne.s32.totalorder %s227, %s229
      %p236 = scmp.eq.s32.totalorder %s23, 3
      %p237 = por %p235, %p236
      %p238 = scmp.ne.s32.totalorder %s229, %s230
      %p239 = scmp.eq.s32.totalorder %s23, 0
      %p240 = por %p238, %p239
      %p241 = scmp.ne.s32.totalorder %s229, %s230
      %p242 = scmp.eq.s32.totalorder %s24, 3
      %p243 = por %p241, %p242
      %p245 = scmp.ne.s32.totalorder %s230, %s244
      %p246 = scmp.eq.s32.totalorder %s24, 0
      %p247 = por %p245, %p246
      %s248 = ssub.s32 %s25, %s37
      %s249 = ssub.s32 %s26, %s33
      %s250 = sor.u32 %s248, %s249
      %p251 = scmp.eq.s32.totalorder %s250, 0
      %s253 = sadd.s32 %s252, 1
      %s254 = scalar_select %p251, %s252, %s253
      %p257 = pneg %p251
      %p258 = scmp.eq.s32.totalorder %s18, 3
      %p259 = por %p257, %p258
      %p260 = scmp.ne.s32.totalorder %s252, %s255
      %p261 = scmp.eq.s32.totalorder %s18, 0
      %p262 = por %p260, %p261
      %p263 = scmp.ne.s32.totalorder %s252, %s255
      %p264 = scmp.eq.s32.totalorder %s23, 3
      %p265 = por %p263, %p264
      %p266 = scmp.ne.s32.totalorder %s255, %s256
      %p267 = scmp.eq.s32.totalorder %s23, 0
      %p268 = por %p266, %p267
      %p269 = scmp.ne.s32.totalorder %s255, %s256
      %p270 = scmp.eq.s32.totalorder %s24, 3
      %p271 = por %p269, %p270
      %p273 = scmp.ne.s32.totalorder %s256, %s272
      %p274 = scmp.eq.s32.totalorder %s24, 0
      %p275 = por %p273, %p274
      %p276 = scmp.le.s32.totalorder 1, %s18
      %p277 = scmp.lt.s32.totalorder %s18, 5
      %p278 = pnand %p276, %p277
      %p279 = pneg %p278
      // Predicated region
      $region9: #{tpu_custom_call.1} parent=5 // pred_check
        _
      $region10: #{tpu_custom_call.1} parent=5 // pred_check_branch
        %281 = sbr.rel (%p278) target = $region12
      $region11: #{tpu_custom_call.1} parent=5 // pred_region
        %s282 = ssub.s32 %s18, 1
        // Predicated region
        $region13: #{tpu_custom_call.1} parent=11 // pred_check
          %p283 = pneg %p135
        $region14: #{tpu_custom_call.1} parent=11 // pred_check_branch
          %285 = sbr.rel (%p283) target = $region16
        $region15: #{tpu_custom_call.1} parent=11 // pred_region
          _
        $region16: #{tpu_custom_call.1} parent=11 // pred_fallthru
          _
        // Predicated region
        $region17: #{tpu_custom_call.1} parent=11 // pred_check
          %p286 = pneg %p156
        $region18: #{tpu_custom_call.1} parent=11 // pred_check_branch
          %288 = sbr.rel (%p286) target = $region20
        $region19: #{tpu_custom_call.1} parent=11 // pred_region
          _
        $region20: #{tpu_custom_call.1} parent=11 // pred_fallthru
          _
        // Predicated region
        $region21: #{tpu_custom_call.1} parent=11 // pred_check
          %p289 = pneg %p177
        $region22: #{tpu_custom_call.1} parent=11 // pred_check_branch
          %291 = sbr.rel (%p289) target = $region24
        $region23: #{tpu_custom_call.1} parent=11 // pred_region
          _
        $region24: #{tpu_custom_call.1} parent=11 // pred_fallthru
          _
        // Predicated region
        $region25: #{tpu_custom_call.1} parent=11 // pred_check
          %p292 = pneg %p198
        $region26: #{tpu_custom_call.1} parent=11 // pred_check_branch
          %294 = sbr.rel (%p292) target = $region28
        $region27: #{tpu_custom_call.1} parent=11 // pred_region
          _
        $region28: #{tpu_custom_call.1} parent=11 // pred_fallthru
          _
        // Predicated region
        $region29: #{tpu_custom_call.1} parent=11 // pred_check
          %p295 = pneg %p219
        $region30: #{tpu_custom_call.1} parent=11 // pred_check_branch
          %297 = sbr.rel (%p295) target = $region32
        $region31: #{tpu_custom_call.1} parent=11 // pred_region
          _
        $region32: #{tpu_custom_call.1} parent=11 // pred_fallthru
          _
        // Predicated region
        $region33: #{tpu_custom_call.1} parent=11 // pred_check
          %p298 = pneg %p240
        $region34: #{tpu_custom_call.1} parent=11 // pred_check_branch
          %300 = sbr.rel (%p298) target = $region36
        $region35: #{tpu_custom_call.1} parent=11 // pred_region
          _
        $region36: #{tpu_custom_call.1} parent=11 // pred_fallthru
          _
      $region12: #{tpu_custom_call.1} parent=5 // pred_fallthru
        _
      %p301 = scmp.lt.s32.totalorder %s18, 4
      // Predicated region
      $region37: #{tpu_custom_call.1} parent=5 // pred_check
        %p302 = pneg %p301
      $region38: #{tpu_custom_call.1} parent=5 // pred_check_branch
        %304 = sbr.rel (%p302) target = $region40
      $region39: #{tpu_custom_call.1} parent=5 // pred_region
        // Predicated region
        $region41: #{tpu_custom_call.1} parent=39 // pred_check
          %p305 = pneg %p52
        $region42: #{tpu_custom_call.1} parent=39 // pred_check_branch
          %307 = sbr.rel (%p305) target = $region44
        $region43: #{tpu_custom_call.1} parent=39 // pred_region
          %p308 = scmp.lt.s32.totalorder %s25, 1
          %s309 = scalar_select %p308, %s25, 1
          %p310 = scmp.lt.s32.totalorder %s26, 1
          %s311 = scalar_select %p310, %s26, 1
          %s312 = smul.addr %s309, 2
          %s313 = sadd.s32 %s311, %s312
          %s314 = smul.addr %s313, 4
          %s315 = scalar_lea.vmem %s0, %s314
        $region44: #{tpu_custom_call.1} parent=39 // pred_fallthru
          _
        // Predicated region
        $region45: #{tpu_custom_call.1} parent=39 // pred_check
          %p316 = pneg %p80
        $region46: #{tpu_custom_call.1} parent=39 // pred_check_branch
          %318 = sbr.rel (%p316) target = $region48
        $region47: #{tpu_custom_call.1} parent=39 // pred_region
          %p319 = scmp.lt.s32.totalorder %s25, 1
          %s320 = scalar_select %p319, %s25, 1
          %p321 = scmp.lt.s32.totalorder %s26, 1
          %s322 = scalar_select %p321, %s26, 1
          %s323 = smul.addr %s320, 2
          %s324 = sadd.s32 %s322, %s323
          %s325 = smul.addr %s324, 4
          %s326 = scalar_lea.vmem %s1, %s325
        $region48: #{tpu_custom_call.1} parent=39 // pred_fallthru
          _
        // Predicated region
        $region49: #{tpu_custom_call.1} parent=39 // pred_check
          %p327 = pneg %p108
        $region50: #{tpu_custom_call.1} parent=39 // pred_check_branch
          %329 = sbr.rel (%p327) target = $region52
        $region51: #{tpu_custom_call.1} parent=39 // pred_region
          %p330 = scmp.lt.s32.totalorder %s25, 1
          %s331 = scalar_select %p330, %s25, 1
          %p332 = scmp.lt.s32.totalorder %s26, 1
          %s333 = scalar_select %p332, %s26, 1
          %s334 = smul.addr %s331, 2
          %s335 = sadd.s32 %s333, %s334
          %s336 = smul.addr %s335, 4
          %s337 = scalar_lea.vmem %s2, %s336
        $region52: #{tpu_custom_call.1} parent=39 // pred_fallthru
          _
      $region40: #{tpu_custom_call.1} parent=5 // pred_fallthru
        _
      %p338 = scmp.le.s32.totalorder 1, %s18
      %p339 = scmp.lt.s32.totalorder %s18, 5
      %p340 = pnand %p338, %p339
      %p341 = pneg %p340
      // Predicated region
      $region53: #{tpu_custom_call.1} parent=5 // pred_check
        _
      $region54: #{tpu_custom_call.1} parent=5 // pred_check_branch
        %343 = sbr.rel (%p340) target = $region56
      $region55: #{tpu_custom_call.1} parent=5 // pred_region
        %s344 = ssub.s32 %s18, 1
        %p345 = scmp.lt.s32.totalorder %s27, 1
        %s346 = scalar_select %p345, %s27, 1
        %p347 = scmp.lt.s32.totalorder %s28, 1
        %s348 = scalar_select %p347, %s28, 1
        %s349 = smul.addr %s346, 2
        %s350 = sadd.s32 %s348, %s349
        %s351 = smul.addr %s350, 4
        %s352 = scalar_lea.vmem %s0, %s351
        %p353 = pneg %p58
        %p354 = pneg %p55
        %p355 = scmp.lt.s32.totalorder %s27, 1
        %s356 = scalar_select %p355, %s27, 1
        %p357 = scmp.lt.s32.totalorder %s28, 1
        %s358 = scalar_select %p357, %s28, 1
        %s359 = smul.addr %s356, 2
        %s360 = sadd.s32 %s358, %s359
        %s361 = smul.addr %s360, 4
        %s362 = scalar_lea.vmem %s1, %s361
        %p363 = pneg %p86
        %p364 = pneg %p83
        %p365 = scmp.lt.s32.totalorder %s27, 1
        %s366 = scalar_select %p365, %s27, 1
        %p367 = scmp.lt.s32.totalorder %s28, 1
        %s368 = scalar_select %p367, %s28, 1
        %s369 = smul.addr %s366, 2
        %s370 = sadd.s32 %s368, %s369
        %s371 = smul.addr %s370, 4
        %s372 = scalar_lea.vmem %s2, %s371
        %p373 = pneg %p114
        %p374 = pneg %p111
        %p375 = pneg %p135
        %p376 = pneg %p132
        %p377 = pneg %p156
        %p378 = pneg %p153
        %p379 = pneg %p177
        %p380 = pneg %p174
        %p381 = pneg %p198
        %p382 = pneg %p195
        %p383 = pneg %p219
        %p384 = pneg %p216
        %p385 = pneg %p240
        %p386 = pneg %p237
        %p387 = pneg %p268
        %p388 = pneg %p265
        %s389 = sand.u32 %s255, 1
        %s390 = scalar_lea.sflag [#allocation3], %s389
        %s391 = sand.u32 %s255, 1
        %s392 = smul.addr %s391, 8
        %s393 = scalar_lea.vmem [#allocation2], %s392
        %p394 = scmp.lt.s32.totalorder %s27, 1
        %s395 = scalar_select %p394, %s27, 1
        %p396 = scmp.lt.s32.totalorder %s28, 1
        %s397 = scalar_select %p396, %s28, 1
        %s398 = smul.addr %s395, 2
        %s399 = sadd.s32 %s397, %s398
        %s400 = smul.addr %s399, 4
        %s401 = scalar_lea.vmem %s0, %s400
        %p402 = scmp.lt.s32.totalorder %s27, 1
        %s403 = scalar_select %p402, %s27, 1
        %p404 = scmp.lt.s32.totalorder %s28, 1
        %s405 = scalar_select %p404, %s28, 1
        %s406 = smul.addr %s403, 2
        %s407 = sadd.s32 %s405, %s406
        %s408 = smul.addr %s407, 4
        %s409 = scalar_lea.vmem %s1, %s408
        %p410 = scmp.lt.s32.totalorder %s27, 1
        %s411 = scalar_select %p410, %s27, 1
        %p412 = scmp.lt.s32.totalorder %s28, 1
        %s413 = scalar_select %p412, %s28, 1
        %s414 = smul.addr %s411, 2
        %s415 = sadd.s32 %s413, %s414
        %s416 = smul.addr %s415, 4
        %s417 = scalar_lea.vmem %s2, %s416
        %v419 = vld [vmem:[%s3] sm:$0xf]
        %v420 = vld [vmem:[%s4] sm:$0xf]
        %v421 = vld [vmem:[%s401] sm:$0xf]
        %423 = vset.pattern.permute.xlu0 0
        %424 = vperm.xlu0 %423, %v419
        %v425 = vpop.permute.xlu0 %424
        %v427 = vmul.f32 %v421, %v425
        %429 = vset.pattern.permute.xlu0 0
        %430 = vperm.xlu0 %429, %v420
        %v431 = vpop.permute.xlu0 %430
        %v433 = vadd.f32 %v427, %v431
        %v434 = vmax.f32 %v433, 0.0
        %v435 = vld [vmem:[%s409] sm:$0xf]
        %v436 = vmul.f32 %v435, %v425
        %v437 = vadd.f32 %v436, %v431
        %v438 = vmax.f32 %v437, 0.0
        %v439 = vld [vmem:[%s417] sm:$0xf]
        %v440 = vmul.f32 %v439, %v425
        %v441 = vadd.f32 %v440, %v431
        %v442 = vmax.f32 %v441, 0.0
        %p443 = scmp.gt.s32.totalorder %s28, 0
        %s444 = scalar_select %p443, 1, 0
        %s445 = scvt.s32.f32 %s444
        %v446 = vstv %s445
        %v447 = vmul.f32 %v438, %v446
        %p448 = scmp.lt.s32.totalorder %s28, 1
        %s449 = scalar_select %p448, 1, 0
        %s450 = scvt.s32.f32 %s449
        %v451 = vstv %s450
        %v452 = vmul.f32 %v442, %v451
        %v453 = vlaneseq
        %v454 = vand.u32 %v453, 127
        %v455 = vand.u32 %v454, 15
        %vm456 = vcmp.ge.s32.totalorder %v455, 1
        %vm457 = vcmp.lt.s32.totalorder %v455, 15
        %459 = vrot.lane.b32.xlu0 %v434, 16
        %v460 = vpop.permute.xlu0 %459
        %vm462 = vcmask 130048
        %v463 = vsel %vm462, %v447, %v460
        %464 = vrot.lane.b32.xlu0 %v434, 112
        %v465 = vpop.permute.xlu0 %464
        %468 = vrot.lane.b32.xlu0 %v452, 112
        %v469 = vpop.permute.xlu0 %468
        %vm471 = vcmask 916480
        %v472 = vsel %vm471, %v465, %v469
        %473 = vrot.lane.b32.xlu0 %v463, 1
        %v474 = vpop.permute.xlu0 %473
        %v475 = vsel %vm456, 1, 0
        %vm476 = vcmp.eq.s32.totalorder %v475, 1
        %v477 = vsel %vm476, %v474, 0.0
        %v478 = vld [vmem:[%s5] sm:$0xf]
        %v479 = vld [vmem:[%s5 + $0x4] sm:$0xf]
        %v480 = vld [vmem:[%s5 + $0x8] sm:$0xf]
        %v481 = vld [vmem:[%s5 + $0xc] sm:$0xf]
        %v482 = vpack.c.bf16 %v477, %v477
        %s483 = scalar_lea.vmem %s5, 16
        %v484 = vld [vmem:[%s483] sm:$0xf]
        %v485 = vld [vmem:[%s483 + $0x4] sm:$0xf]
        %v486 = vld [vmem:[%s483 + $0x8] sm:$0xf]
        %v487 = vld [vmem:[%s483 + $0xc] sm:$0xf]
        %v488 = vpack.c.bf16 %v463, %v463
        %v493 = vunpack.c.l.b16 %v484
        %v494 = vunpack.c.l.b16 %v485
        %v495 = vunpack.c.l.b16 %v486
        %v496 = vunpack.c.l.b16 %v487
        %v497 = vpack.c.b16 %v494, %v493
        %v498 = vpack.c.b16 %v496, %v495
        %vm499 = vcmask 31744
        %v501 = vsel %vm499, %v497, 0
        %v504 = vsel %vm499, %v498, 0
        %vm506 = vcmask 1041408
        %v508 = vsel %vm506, %v488, 0
        %510 = vmatprep.subr.bf16.mxu0 0
        %511 = vmatpush1.bf16.msra.mxu0 0
        %512 = vmatprep.subr.bf16.mxu0 0
        %513 = vmatpush1.bf16.msra.mxu0 0
        %514 = vmatprep.subr.bf16.mxu0 0
        %515 = vmatpush1.bf16.msra.mxu0 0
        %516 = vmatprep.subr.bf16.mxu0 0
        %517 = vmatpush1.bf16.msra.mxu0 0
        %518 = vmatprep.subr.bf16.mxu0 0
        %519 = vmatpush1.bf16.msra.mxu0 0
        %520 = vmatprep.subr.bf16.mxu0 0
        %521 = vmatpush1.bf16.msra.mxu0 0
        %522 = vmatprep.subr.bf16.mxu0 0
        %523 = vmatpush1.bf16.msra.mxu0 0
        %524 = vmatprep.subr.bf16.mxu0 0
        %525 = vmatpush1.bf16.msra.mxu0 %v508
        %526 = vmatprep.subr.bf16.mxu0 0
        %527 = vmatpush2.bf16.msra.mxu0 0
        %528 = vmatprep.subr.bf16.mxu0 0
        %529 = vmatpush2.bf16.msra.mxu0 0
        %530 = vmatprep.subr.bf16.mxu0 0
        %531 = vmatpush2.bf16.msra.mxu0 0
        %532 = vmatprep.subr.bf16.mxu0 0
        %533 = vmatpush2.bf16.msra.mxu0 0
        %534 = vmatprep.subr.bf16.mxu0 0
        %535 = vmatpush2.bf16.msra.mxu0 0
        %536 = vmatprep.subr.bf16.mxu0 0
        %537 = vmatpush2.bf16.msra.mxu0 0
        %538 = vmatprep.subr.bf16.mxu0 0
        %539 = vmatpush2.bf16.msra.mxu0 0
        %540 = vmatprep.subr.bf16.mxu0 0
        %541 = vmatpush2.bf16.msra.mxu0 0
        %542 = vmatprep.mubr.bf16.mxu0 0
        %543 = vmatmul.mubr.bf16.gmra.mxu0 %v501
        %v544 = vpop.f32.mrf.mxu0
        %v545 = vadd.f32 0.0, %v544
        %v546 = vpop.f32.mrf.mxu0
        %v547 = vpop.f32.mrf.mxu0
        %v548 = vadd.f32 0.0, %v547
        %v549 = vpop.f32.mrf.mxu0
        %550 = vmatprep.mubr.bf16.mxu0 0
        %551 = vmatmul.mubr.bf16.gmra.mxu0 %v504
        %v552 = vpop.f32.mrf.mxu0
        %v553 = vadd.f32 0.0, %v552
        %v554 = vpop.f32.mrf.mxu0
        %v555 = vpop.f32.mrf.mxu0
        %v556 = vadd.f32 0.0, %v555
        %v557 = vpop.f32.mrf.mxu0
        %558 = vdwg.mxu0
        %v563 = vunpack.c.l.b16 %v478
        %v564 = vunpack.c.l.b16 %v479
        %v565 = vunpack.c.l.b16 %v480
        %v566 = vunpack.c.l.b16 %v481
        %v567 = vpack.c.b16 %v564, %v563
        %v568 = vpack.c.b16 %v566, %v565
        %v570 = vsel %vm499, %v567, 0
        %v573 = vsel %vm499, %v568, 0
        %v576 = vsel %vm506, %v482, 0
        %578 = vmatprep.subr.bf16.mxu0 0
        %579 = vmatpush1.bf16.msra.mxu0 0
        %580 = vmatprep.subr.bf16.mxu0 0
        %581 = vmatpush1.bf16.msra.mxu0 0
        %582 = vmatprep.subr.bf16.mxu0 0
        %583 = vmatpush1.bf16.msra.mxu0 0
        %584 = vmatprep.subr.bf16.mxu0 0
        %585 = vmatpush1.bf16.msra.mxu0 0
        %586 = vmatprep.subr.bf16.mxu0 0
        %587 = vmatpush1.bf16.msra.mxu0 0
        %588 = vmatprep.subr.bf16.mxu0 0
        %589 = vmatpush1.bf16.msra.mxu0 0
        %590 = vmatprep.subr.bf16.mxu0 0
        %591 = vmatpush1.bf16.msra.mxu0 0
        %592 = vmatprep.subr.bf16.mxu0 0
        %593 = vmatpush1.bf16.msra.mxu0 %v576
        %594 = vmatprep.subr.bf16.mxu0 0
        %595 = vmatpush2.bf16.msra.mxu0 0
        %596 = vmatprep.subr.bf16.mxu0 0
        %597 = vmatpush2.bf16.msra.mxu0 0
        %598 = vmatprep.subr.bf16.mxu0 0
        %599 = vmatpush2.bf16.msra.mxu0 0
        %600 = vmatprep.subr.bf16.mxu0 0
        %601 = vmatpush2.bf16.msra.mxu0 0
        %602 = vmatprep.subr.bf16.mxu0 0
        %603 = vmatpush2.bf16.msra.mxu0 0
        %604 = vmatprep.subr.bf16.mxu0 0
        %605 = vmatpush2.bf16.msra.mxu0 0
        %606 = vmatprep.subr.bf16.mxu0 0
        %607 = vmatpush2.bf16.msra.mxu0 0
        %608 = vmatprep.subr.bf16.mxu0 0
        %609 = vmatpush2.bf16.msra.mxu0 0
        %610 = vmatprep.mubr.bf16.mxu0 0
        %611 = vmatmul.mubr.bf16.gmra.mxu0 %v570
        %v612 = vpop.f32.mrf.mxu0
        %v613 = vadd.f32 %v545, %v612
        %v614 = vpop.f32.mrf.mxu0
        %v615 = vpop.f32.mrf.mxu0
        %v616 = vadd.f32 %v548, %v615
        %v617 = vpop.f32.mrf.mxu0
        %618 = vmatprep.mubr.bf16.mxu0 0
        %619 = vmatmul.mubr.bf16.gmra.mxu0 %v573
        %v620 = vpop.f32.mrf.mxu0
        %v621 = vadd.f32 %v553, %v620
        %v622 = vpop.f32.mrf.mxu0
        %v623 = vpop.f32.mrf.mxu0
        %v624 = vadd.f32 %v556, %v623
        %v625 = vpop.f32.mrf.mxu0
        %626 = vdwg.mxu0
        %627 = vrot.lane.b32.xlu0 %v463, 127
        %v628 = vpop.permute.xlu0 %627
        %v629 = vsel %vm457, 1, 0
        %vm630 = vcmp.eq.s32.totalorder %v629, 1
        %v631 = vsel %vm630, %v628, 0.0
        %s632 = scalar_lea.vmem %s5, 32
        %v633 = vld [vmem:[%s632] sm:$0xf]
        %v634 = vld [vmem:[%s632 + $0x4] sm:$0xf]
        %v635 = vld [vmem:[%s632 + $0x8] sm:$0xf]
        %v636 = vld [vmem:[%s632 + $0xc] sm:$0xf]
        %v637 = vpack.c.bf16 %v631, %v631
        %v642 = vunpack.c.l.b16 %v633
        %v643 = vunpack.c.l.b16 %v634
        %v644 = vunpack.c.l.b16 %v635
        %v645 = vunpack.c.l.b16 %v636
        %v646 = vpack.c.b16 %v643, %v642
        %v647 = vpack.c.b16 %v645, %v644
        %v649 = vsel %vm499, %v646, 0
        %v652 = vsel %vm499, %v647, 0
        %v655 = vsel %vm506, %v637, 0
        %657 = vmatprep.subr.bf16.mxu0 0
        %658 = vmatpush1.bf16.msra.mxu0 0
        %659 = vmatprep.subr.bf16.mxu0 0
        %660 = vmatpush1.bf16.msra.mxu0 0
        %661 = vmatprep.subr.bf16.mxu0 0
        %662 = vmatpush1.bf16.msra.mxu0 0
        %663 = vmatprep.subr.bf16.mxu0 0
        %664 = vmatpush1.bf16.msra.mxu0 0
        %665 = vmatprep.subr.bf16.mxu0 0
        %666 = vmatpush1.bf16.msra.mxu0 0
        %667 = vmatprep.subr.bf16.mxu0 0
        %668 = vmatpush1.bf16.msra.mxu0 0
        %669 = vmatprep.subr.bf16.mxu0 0
        %670 = vmatpush1.bf16.msra.mxu0 0
        %671 = vmatprep.subr.bf16.mxu0 0
        %672 = vmatpush1.bf16.msra.mxu0 %v655
        %673 = vmatprep.subr.bf16.mxu0 0
        %674 = vmatpush2.bf16.msra.mxu0 0
        %675 = vmatprep.subr.bf16.mxu0 0
        %676 = vmatpush2.bf16.msra.mxu0 0
        %677 = vmatprep.subr.bf16.mxu0 0
        %678 = vmatpush2.bf16.msra.mxu0 0
        %679 = vmatprep.subr.bf16.mxu0 0
        %680 = vmatpush2.bf16.msra.mxu0 0
        %681 = vmatprep.subr.bf16.mxu0 0
        %682 = vmatpush2.bf16.msra.mxu0 0
        %683 = vmatprep.subr.bf16.mxu0 0
        %684 = vmatpush2.bf16.msra.mxu0 0
        %685 = vmatprep.subr.bf16.mxu0 0
        %686 = vmatpush2.bf16.msra.mxu0 0
        %687 = vmatprep.subr.bf16.mxu0 0
        %688 = vmatpush2.bf16.msra.mxu0 0
        %689 = vmatprep.mubr.bf16.mxu0 0
        %690 = vmatmul.mubr.bf16.gmra.mxu0 %v649
        %v691 = vpop.f32.mrf.mxu0
        %v692 = vadd.f32 0.0, %v691
        %v693 = vpop.f32.mrf.mxu0
        %v694 = vpop.f32.mrf.mxu0
        %v695 = vadd.f32 0.0, %v694
        %v696 = vpop.f32.mrf.mxu0
        %697 = vmatprep.mubr.bf16.mxu0 0
        %698 = vmatmul.mubr.bf16.gmra.mxu0 %v652
        %v699 = vpop.f32.mrf.mxu0
        %v700 = vadd.f32 0.0, %v699
        %v701 = vpop.f32.mrf.mxu0
        %v702 = vpop.f32.mrf.mxu0
        %v703 = vadd.f32 0.0, %v702
        %v704 = vpop.f32.mrf.mxu0
        %705 = vdwg.mxu0
        %v706 = vadd.f32 %v613, %v692
        %v707 = vadd.f32 %v616, %v695
        %v708 = vadd.f32 %v621, %v700
        %v709 = vadd.f32 %v624, %v703
        %710 = vrot.lane.b32.xlu0 %v434, 1
        %v711 = vpop.permute.xlu0 %710
        %v712 = vsel %vm476, %v711, 0.0
        %s713 = scalar_lea.vmem %s5, 48
        %v714 = vld [vmem:[%s713] sm:$0xf]
        %v715 = vld [vmem:[%s713 + $0x4] sm:$0xf]
        %v716 = vld [vmem:[%s713 + $0x8] sm:$0xf]
        %v717 = vld [vmem:[%s713 + $0xc] sm:$0xf]
        %v718 = vpack.c.bf16 %v712, %v712
        %v723 = vunpack.c.l.b16 %v714
        %v724 = vunpack.c.l.b16 %v715
        %v725 = vunpack.c.l.b16 %v716
        %v726 = vunpack.c.l.b16 %v717
        %v727 = vpack.c.b16 %v724, %v723
        %v728 = vpack.c.b16 %v726, %v725
        %v730 = vsel %vm499, %v727, 0
        %v733 = vsel %vm499, %v728, 0
        %v736 = vsel %vm506, %v718, 0
        %738 = vmatprep.subr.bf16.mxu0 0
        %739 = vmatpush1.bf16.msra.mxu0 0
        %740 = vmatprep.subr.bf16.mxu0 0
        %741 = vmatpush1.bf16.msra.mxu0 0
        %742 = vmatprep.subr.bf16.mxu0 0
        %743 = vmatpush1.bf16.msra.mxu0 0
        %744 = vmatprep.subr.bf16.mxu0 0
        %745 = vmatpush1.bf16.msra.mxu0 0
        %746 = vmatprep.subr.bf16.mxu0 0
        %747 = vmatpush1.bf16.msra.mxu0 0
        %748 = vmatprep.subr.bf16.mxu0 0
        %749 = vmatpush1.bf16.msra.mxu0 0
        %750 = vmatprep.subr.bf16.mxu0 0
        %751 = vmatpush1.bf16.msra.mxu0 0
        %752 = vmatprep.subr.bf16.mxu0 0
        %753 = vmatpush1.bf16.msra.mxu0 %v736
        %754 = vmatprep.subr.bf16.mxu0 0
        %755 = vmatpush2.bf16.msra.mxu0 0
        %756 = vmatprep.subr.bf16.mxu0 0
        %757 = vmatpush2.bf16.msra.mxu0 0
        %758 = vmatprep.subr.bf16.mxu0 0
        %759 = vmatpush2.bf16.msra.mxu0 0
        %760 = vmatprep.subr.bf16.mxu0 0
        %761 = vmatpush2.bf16.msra.mxu0 0
        %762 = vmatprep.subr.bf16.mxu0 0
        %763 = vmatpush2.bf16.msra.mxu0 0
        %764 = vmatprep.subr.bf16.mxu0 0
        %765 = vmatpush2.bf16.msra.mxu0 0
        %766 = vmatprep.subr.bf16.mxu0 0
        %767 = vmatpush2.bf16.msra.mxu0 0
        %768 = vmatprep.subr.bf16.mxu0 0
        %769 = vmatpush2.bf16.msra.mxu0 0
        %770 = vmatprep.mubr.bf16.mxu0 0
        %771 = vmatmul.mubr.bf16.gmra.mxu0 %v730
        %v772 = vpop.f32.mrf.mxu0
        %v773 = vadd.f32 0.0, %v772
        %v774 = vpop.f32.mrf.mxu0
        %v775 = vpop.f32.mrf.mxu0
        %v776 = vadd.f32 0.0, %v775
        %v777 = vpop.f32.mrf.mxu0
        %778 = vmatprep.mubr.bf16.mxu0 0
        %779 = vmatmul.mubr.bf16.gmra.mxu0 %v733
        %v780 = vpop.f32.mrf.mxu0
        %v781 = vadd.f32 0.0, %v780
        %v782 = vpop.f32.mrf.mxu0
        %v783 = vpop.f32.mrf.mxu0
        %v784 = vadd.f32 0.0, %v783
        %v785 = vpop.f32.mrf.mxu0
        %786 = vdwg.mxu0
        %v787 = vadd.f32 %v706, %v773
        %v788 = vadd.f32 %v707, %v776
        %v789 = vadd.f32 %v708, %v781
        %v790 = vadd.f32 %v709, %v784
        %s791 = scalar_lea.vmem %s5, 64
        %v792 = vld [vmem:[%s791] sm:$0xf]
        %v793 = vld [vmem:[%s791 + $0x4] sm:$0xf]
        %v794 = vld [vmem:[%s791 + $0x8] sm:$0xf]
        %v795 = vld [vmem:[%s791 + $0xc] sm:$0xf]
        %v796 = vpack.c.bf16 %v434, %v434
        %v801 = vunpack.c.l.b16 %v792
        %v802 = vunpack.c.l.b16 %v793
        %v803 = vunpack.c.l.b16 %v794
        %v804 = vunpack.c.l.b16 %v795
        %v805 = vpack.c.b16 %v802, %v801
        %v806 = vpack.c.b16 %v804, %v803
        %v808 = vsel %vm499, %v805, 0
        %v811 = vsel %vm499, %v806, 0
        %v814 = vsel %vm506, %v796, 0
        %816 = vmatprep.subr.bf16.mxu0 0
        %817 = vmatpush1.bf16.msra.mxu0 0
        %818 = vmatprep.subr.bf16.mxu0 0
        %819 = vmatpush1.bf16.msra.mxu0 0
        %820 = vmatprep.subr.bf16.mxu0 0
        %821 = vmatpush1.bf16.msra.mxu0 0
        %822 = vmatprep.subr.bf16.mxu0 0
        %823 = vmatpush1.bf16.msra.mxu0 0
        %824 = vmatprep.subr.bf16.mxu0 0
        %825 = vmatpush1.bf16.msra.mxu0 0
        %826 = vmatprep.subr.bf16.mxu0 0
        %827 = vmatpush1.bf16.msra.mxu0 0
        %828 = vmatprep.subr.bf16.mxu0 0
        %829 = vmatpush1.bf16.msra.mxu0 0
        %830 = vmatprep.subr.bf16.mxu0 0
        %831 = vmatpush1.bf16.msra.mxu0 %v814
        %832 = vmatprep.subr.bf16.mxu0 0
        %833 = vmatpush2.bf16.msra.mxu0 0
        %834 = vmatprep.subr.bf16.mxu0 0
        %835 = vmatpush2.bf16.msra.mxu0 0
        %836 = vmatprep.subr.bf16.mxu0 0
        %837 = vmatpush2.bf16.msra.mxu0 0
        %838 = vmatprep.subr.bf16.mxu0 0
        %839 = vmatpush2.bf16.msra.mxu0 0
        %840 = vmatprep.subr.bf16.mxu0 0
        %841 = vmatpush2.bf16.msra.mxu0 0
        %842 = vmatprep.subr.bf16.mxu0 0
        %843 = vmatpush2.bf16.msra.mxu0 0
        %844 = vmatprep.subr.bf16.mxu0 0
        %845 = vmatpush2.bf16.msra.mxu0 0
        %846 = vmatprep.subr.bf16.mxu0 0
        %847 = vmatpush2.bf16.msra.mxu0 0
        %848 = vmatprep.mubr.bf16.mxu0 0
        %849 = vmatmul.mubr.bf16.gmra.mxu0 %v808
        %v850 = vpop.f32.mrf.mxu0
        %v851 = vadd.f32 0.0, %v850
        %v852 = vpop.f32.mrf.mxu0
        %v853 = vpop.f32.mrf.mxu0
        %v854 = vadd.f32 0.0, %v853
        %v855 = vpop.f32.mrf.mxu0
        %856 = vmatprep.mubr.bf16.mxu0 0
        %857 = vmatmul.mubr.bf16.gmra.mxu0 %v811
        %v858 = vpop.f32.mrf.mxu0
        %v859 = vadd.f32 0.0, %v858
        %v860 = vpop.f32.mrf.mxu0
        %v861 = vpop.f32.mrf.mxu0
        %v862 = vadd.f32 0.0, %v861
        %v863 = vpop.f32.mrf.mxu0
        %864 = vdwg.mxu0
        %v865 = vadd.f32 %v787, %v851
        %v866 = vadd.f32 %v788, %v854
        %v867 = vadd.f32 %v789, %v859
        %v868 = vadd.f32 %v790, %v862
        %869 = vrot.lane.b32.xlu0 %v434, 127
        %v870 = vpop.permute.xlu0 %869
        %v871 = vsel %vm630, %v870, 0.0
        %s872 = scalar_lea.vmem %s5, 80
        %v873 = vld [vmem:[%s872] sm:$0xf]
        %v874 = vld [vmem:[%s872 + $0x4] sm:$0xf]
        %v875 = vld [vmem:[%s872 + $0x8] sm:$0xf]
        %v876 = vld [vmem:[%s872 + $0xc] sm:$0xf]
        %v877 = vpack.c.bf16 %v871, %v871
        %v882 = vunpack.c.l.b16 %v873
        %v883 = vunpack.c.l.b16 %v874
        %v884 = vunpack.c.l.b16 %v875
        %v885 = vunpack.c.l.b16 %v876
        %v886 = vpack.c.b16 %v883, %v882
        %v887 = vpack.c.b16 %v885, %v884
        %v889 = vsel %vm499, %v886, 0
        %v892 = vsel %vm499, %v887, 0
        %v895 = vsel %vm506, %v877, 0
        %897 = vmatprep.subr.bf16.mxu0 0
        %898 = vmatpush1.bf16.msra.mxu0 0
        %899 = vmatprep.subr.bf16.mxu0 0
        %900 = vmatpush1.bf16.msra.mxu0 0
        %901 = vmatprep.subr.bf16.mxu0 0
        %902 = vmatpush1.bf16.msra.mxu0 0
        %903 = vmatprep.subr.bf16.mxu0 0
        %904 = vmatpush1.bf16.msra.mxu0 0
        %905 = vmatprep.subr.bf16.mxu0 0
        %906 = vmatpush1.bf16.msra.mxu0 0
        %907 = vmatprep.subr.bf16.mxu0 0
        %908 = vmatpush1.bf16.msra.mxu0 0
        %909 = vmatprep.subr.bf16.mxu0 0
        %910 = vmatpush1.bf16.msra.mxu0 0
        %911 = vmatprep.subr.bf16.mxu0 0
        %912 = vmatpush1.bf16.msra.mxu0 %v895
        %913 = vmatprep.subr.bf16.mxu0 0
        %914 = vmatpush2.bf16.msra.mxu0 0
        %915 = vmatprep.subr.bf16.mxu0 0
        %916 = vmatpush2.bf16.msra.mxu0 0
        %917 = vmatprep.subr.bf16.mxu0 0
        %918 = vmatpush2.bf16.msra.mxu0 0
        %919 = vmatprep.subr.bf16.mxu0 0
        %920 = vmatpush2.bf16.msra.mxu0 0
        %921 = vmatprep.subr.bf16.mxu0 0
        %922 = vmatpush2.bf16.msra.mxu0 0
        %923 = vmatprep.subr.bf16.mxu0 0
        %924 = vmatpush2.bf16.msra.mxu0 0
        %925 = vmatprep.subr.bf16.mxu0 0
        %926 = vmatpush2.bf16.msra.mxu0 0
        %927 = vmatprep.subr.bf16.mxu0 0
        %928 = vmatpush2.bf16.msra.mxu0 0
        %929 = vmatprep.mubr.bf16.mxu0 0
        %930 = vmatmul.mubr.bf16.gmra.mxu0 %v889
        %v931 = vpop.f32.mrf.mxu0
        %v932 = vadd.f32 0.0, %v931
        %v933 = vpop.f32.mrf.mxu0
        %v934 = vpop.f32.mrf.mxu0
        %v935 = vadd.f32 0.0, %v934
        %v936 = vpop.f32.mrf.mxu0
        %937 = vmatprep.mubr.bf16.mxu0 0
        %938 = vmatmul.mubr.bf16.gmra.mxu0 %v892
        %v939 = vpop.f32.mrf.mxu0
        %v940 = vadd.f32 0.0, %v939
        %v941 = vpop.f32.mrf.mxu0
        %v942 = vpop.f32.mrf.mxu0
        %v943 = vadd.f32 0.0, %v942
        %v944 = vpop.f32.mrf.mxu0
        %945 = vdwg.mxu0
        %v946 = vadd.f32 %v865, %v932
        %v947 = vadd.f32 %v866, %v935
        %v948 = vadd.f32 %v867, %v940
        %v949 = vadd.f32 %v868, %v943
        %950 = vrot.lane.b32.xlu0 %v472, 1
        %v951 = vpop.permute.xlu0 %950
        %v952 = vsel %vm476, %v951, 0.0
        %s953 = scalar_lea.vmem %s5, 96
        %v954 = vld [vmem:[%s953] sm:$0xf]
        %v955 = vld [vmem:[%s953 + $0x4] sm:$0xf]
        %v956 = vld [vmem:[%s953 + $0x8] sm:$0xf]
        %v957 = vld [vmem:[%s953 + $0xc] sm:$0xf]
        %v958 = vpack.c.bf16 %v952, %v952
        %v963 = vunpack.c.l.b16 %v954
        %v964 = vunpack.c.l.b16 %v955
        %v965 = vunpack.c.l.b16 %v956
        %v966 = vunpack.c.l.b16 %v957
        %v967 = vpack.c.b16 %v964, %v963
        %v968 = vpack.c.b16 %v966, %v965
        %v970 = vsel %vm499, %v967, 0
        %v973 = vsel %vm499, %v968, 0
        %v976 = vsel %vm506, %v958, 0
        %978 = vmatprep.subr.bf16.mxu0 0
        %979 = vmatpush1.bf16.msra.mxu0 0
        %980 = vmatprep.subr.bf16.mxu0 0
        %981 = vmatpush1.bf16.msra.mxu0 0
        %982 = vmatprep.subr.bf16.mxu0 0
        %983 = vmatpush1.bf16.msra.mxu0 0
        %984 = vmatprep.subr.bf16.mxu0 0
        %985 = vmatpush1.bf16.msra.mxu0 0
        %986 = vmatprep.subr.bf16.mxu0 0
        %987 = vmatpush1.bf16.msra.mxu0 0
        %988 = vmatprep.subr.bf16.mxu0 0
        %989 = vmatpush1.bf16.msra.mxu0 0
        %990 = vmatprep.subr.bf16.mxu0 0
        %991 = vmatpush1.bf16.msra.mxu0 0
        %992 = vmatprep.subr.bf16.mxu0 0
        %993 = vmatpush1.bf16.msra.mxu0 %v976
        %994 = vmatprep.subr.bf16.mxu0 0
        %995 = vmatpush2.bf16.msra.mxu0 0
        %996 = vmatprep.subr.bf16.mxu0 0
        %997 = vmatpush2.bf16.msra.mxu0 0
        %998 = vmatprep.subr.bf16.mxu0 0
        %999 = vmatpush2.bf16.msra.mxu0 0
        %1000 = vmatprep.subr.bf16.mxu0 0
        %1001 = vmatpush2.bf16.msra.mxu0 0
        %1002 = vmatprep.subr.bf16.mxu0 0
        %1003 = vmatpush2.bf16.msra.mxu0 0
        %1004 = vmatprep.subr.bf16.mxu0 0
        %1005 = vmatpush2.bf16.msra.mxu0 0
        %1006 = vmatprep.subr.bf16.mxu0 0
        %1007 = vmatpush2.bf16.msra.mxu0 0
        %1008 = vmatprep.subr.bf16.mxu0 0
        %1009 = vmatpush2.bf16.msra.mxu0 0
        %1010 = vmatprep.mubr.bf16.mxu0 0
        %1011 = vmatmul.mubr.bf16.gmra.mxu0 %v970
        %v1012 = vpop.f32.mrf.mxu0
        %v1013 = vadd.f32 0.0, %v1012
        %v1014 = vpop.f32.mrf.mxu0
        %v1015 = vpop.f32.mrf.mxu0
        %v1016 = vadd.f32 0.0, %v1015
        %v1017 = vpop.f32.mrf.mxu0
        %1018 = vmatprep.mubr.bf16.mxu0 0
        %1019 = vmatmul.mubr.bf16.gmra.mxu0 %v973
        %v1020 = vpop.f32.mrf.mxu0
        %v1021 = vadd.f32 0.0, %v1020
        %v1022 = vpop.f32.mrf.mxu0
        %v1023 = vpop.f32.mrf.mxu0
        %v1024 = vadd.f32 0.0, %v1023
        %v1025 = vpop.f32.mrf.mxu0
        %1026 = vdwg.mxu0
        %v1027 = vadd.f32 %v946, %v1013
        %v1028 = vadd.f32 %v947, %v1016
        %v1029 = vadd.f32 %v948, %v1021
        %v1030 = vadd.f32 %v949, %v1024
        %s1031 = scalar_lea.vmem %s5, 112
        %v1032 = vld [vmem:[%s1031] sm:$0xf]
        %v1033 = vld [vmem:[%s1031 + $0x4] sm:$0xf]
        %v1034 = vld [vmem:[%s1031 + $0x8] sm:$0xf]
        %v1035 = vld [vmem:[%s1031 + $0xc] sm:$0xf]
        %v1036 = vpack.c.bf16 %v472, %v472
        %v1041 = vunpack.c.l.b16 %v1032
        %v1042 = vunpack.c.l.b16 %v1033
        %v1043 = vunpack.c.l.b16 %v1034
        %v1044 = vunpack.c.l.b16 %v1035
        %v1045 = vpack.c.b16 %v1042, %v1041
        %v1046 = vpack.c.b16 %v1044, %v1043
        %v1048 = vsel %vm499, %v1045, 0
        %v1051 = vsel %vm499, %v1046, 0
        %v1054 = vsel %vm506, %v1036, 0
        %1056 = vmatprep.subr.bf16.mxu0 0
        %1057 = vmatpush1.bf16.msra.mxu0 0
        %1058 = vmatprep.subr.bf16.mxu0 0
        %1059 = vmatpush1.bf16.msra.mxu0 0
        %1060 = vmatprep.subr.bf16.mxu0 0
        %1061 = vmatpush1.bf16.msra.mxu0 0
        %1062 = vmatprep.subr.bf16.mxu0 0
        %1063 = vmatpush1.bf16.msra.mxu0 0
        %1064 = vmatprep.subr.bf16.mxu0 0
        %1065 = vmatpush1.bf16.msra.mxu0 0
        %1066 = vmatprep.subr.bf16.mxu0 0
        %1067 = vmatpush1.bf16.msra.mxu0 0
        %1068 = vmatprep.subr.bf16.mxu0 0
        %1069 = vmatpush1.bf16.msra.mxu0 0
        %1070 = vmatprep.subr.bf16.mxu0 0
        %1071 = vmatpush1.bf16.msra.mxu0 %v1054
        %1072 = vmatprep.subr.bf16.mxu0 0
        %1073 = vmatpush2.bf16.msra.mxu0 0
        %1074 = vmatprep.subr.bf16.mxu0 0
        %1075 = vmatpush2.bf16.msra.mxu0 0
        %1076 = vmatprep.subr.bf16.mxu0 0
        %1077 = vmatpush2.bf16.msra.mxu0 0
        %1078 = vmatprep.subr.bf16.mxu0 0
        %1079 = vmatpush2.bf16.msra.mxu0 0
        %1080 = vmatprep.subr.bf16.mxu0 0
        %1081 = vmatpush2.bf16.msra.mxu0 0
        %1082 = vmatprep.subr.bf16.mxu0 0
        %1083 = vmatpush2.bf16.msra.mxu0 0
        %1084 = vmatprep.subr.bf16.mxu0 0
        %1085 = vmatpush2.bf16.msra.mxu0 0
        %1086 = vmatprep.subr.bf16.mxu0 0
        %1087 = vmatpush2.bf16.msra.mxu0 0
        %1088 = vmatprep.mubr.bf16.mxu0 0
        %1089 = vmatmul.mubr.bf16.gmra.mxu0 %v1048
        %v1090 = vpop.f32.mrf.mxu0
        %v1091 = vadd.f32 0.0, %v1090
        %v1092 = vpop.f32.mrf.mxu0
        %v1093 = vpop.f32.mrf.mxu0
        %v1094 = vadd.f32 0.0, %v1093
        %v1095 = vpop.f32.mrf.mxu0
        %1096 = vmatprep.mubr.bf16.mxu0 0
        %1097 = vmatmul.mubr.bf16.gmra.mxu0 %v1051
        %v1098 = vpop.f32.mrf.mxu0
        %v1099 = vadd.f32 0.0, %v1098
        %v1100 = vpop.f32.mrf.mxu0
        %v1101 = vpop.f32.mrf.mxu0
        %v1102 = vadd.f32 0.0, %v1101
        %v1103 = vpop.f32.mrf.mxu0
        %1104 = vdwg.mxu0
        %v1105 = vadd.f32 %v1027, %v1091
        %v1106 = vadd.f32 %v1028, %v1094
        %v1107 = vadd.f32 %v1029, %v1099
        %v1108 = vadd.f32 %v1030, %v1102
        %1109 = vrot.lane.b32.xlu0 %v472, 127
        %v1110 = vpop.permute.xlu0 %1109
        %v1111 = vsel %vm630, %v1110, 0.0
        %s1112 = scalar_lea.vmem %s5, 128
        %v1113 = vld [vmem:[%s1112] sm:$0xf]
        %v1114 = vld [vmem:[%s1112 + $0x4] sm:$0xf]
        %v1115 = vld [vmem:[%s1112 + $0x8] sm:$0xf]
        %v1116 = vld [vmem:[%s1112 + $0xc] sm:$0xf]
        %v1117 = vpack.c.bf16 %v1111, %v1111
        %v1122 = vunpack.c.l.b16 %v1113
        %v1123 = vunpack.c.l.b16 %v1114
        %v1124 = vunpack.c.l.b16 %v1115
        %v1125 = vunpack.c.l.b16 %v1116
        %v1126 = vpack.c.b16 %v1123, %v1122
        %v1127 = vpack.c.b16 %v1125, %v1124
        %v1129 = vsel %vm499, %v1126, 0
        %v1132 = vsel %vm499, %v1127, 0
        %v1135 = vsel %vm506, %v1117, 0
        %1137 = vmatprep.subr.bf16.mxu0 0
        %1138 = vmatpush1.bf16.msra.mxu0 0
        %1139 = vmatprep.subr.bf16.mxu0 0
        %1140 = vmatpush1.bf16.msra.mxu0 0
        %1141 = vmatprep.subr.bf16.mxu0 0
        %1142 = vmatpush1.bf16.msra.mxu0 0
        %1143 = vmatprep.subr.bf16.mxu0 0
        %1144 = vmatpush1.bf16.msra.mxu0 0
        %1145 = vmatprep.subr.bf16.mxu0 0
        %1146 = vmatpush1.bf16.msra.mxu0 0
        %1147 = vmatprep.subr.bf16.mxu0 0
        %1148 = vmatpush1.bf16.msra.mxu0 0
        %1149 = vmatprep.subr.bf16.mxu0 0
        %1150 = vmatpush1.bf16.msra.mxu0 0
        %1151 = vmatprep.subr.bf16.mxu0 0
        %1152 = vmatpush1.bf16.msra.mxu0 %v1135
        %1153 = vmatprep.subr.bf16.mxu0 0
        %1154 = vmatpush2.bf16.msra.mxu0 0
        %1155 = vmatprep.subr.bf16.mxu0 0
        %1156 = vmatpush2.bf16.msra.mxu0 0
        %1157 = vmatprep.subr.bf16.mxu0 0
        %1158 = vmatpush2.bf16.msra.mxu0 0
        %1159 = vmatprep.subr.bf16.mxu0 0
        %1160 = vmatpush2.bf16.msra.mxu0 0
        %1161 = vmatprep.subr.bf16.mxu0 0
        %1162 = vmatpush2.bf16.msra.mxu0 0
        %1163 = vmatprep.subr.bf16.mxu0 0
        %1164 = vmatpush2.bf16.msra.mxu0 0
        %1165 = vmatprep.subr.bf16.mxu0 0
        %1166 = vmatpush2.bf16.msra.mxu0 0
        %1167 = vmatprep.subr.bf16.mxu0 0
        %1168 = vmatpush2.bf16.msra.mxu0 0
        %1169 = vmatprep.mubr.bf16.mxu0 0
        %1170 = vmatmul.mubr.bf16.gmra.mxu0 %v1129
        %v1171 = vpop.f32.mrf.mxu0
        %v1172 = vadd.f32 0.0, %v1171
        %v1173 = vpop.f32.mrf.mxu0
        %v1174 = vpop.f32.mrf.mxu0
        %v1175 = vadd.f32 0.0, %v1174
        %v1176 = vpop.f32.mrf.mxu0
        %1177 = vmatprep.mubr.bf16.mxu0 0
        %1178 = vmatmul.mubr.bf16.gmra.mxu0 %v1132
        %v1179 = vpop.f32.mrf.mxu0
        %v1180 = vadd.f32 0.0, %v1179
        %v1181 = vpop.f32.mrf.mxu0
        %v1182 = vpop.f32.mrf.mxu0
        %v1183 = vadd.f32 0.0, %v1182
        %v1184 = vpop.f32.mrf.mxu0
        %1185 = vdwg.mxu0
        %v1186 = vadd.f32 %v1105, %v1172
        %v1187 = vadd.f32 %v1106, %v1175
        %v1188 = vadd.f32 %v1107, %v1180
        %v1189 = vadd.f32 %v1108, %v1183
        %v1190 = vld [vmem:[%s6] sm:$0xff]
        %v1191 = vld [vmem:[%s6 + $0x8] sm:$0xff]
        %v1192 = vld [vmem:[%s6 + $0x10] sm:$0xff]
        %v1193 = vld [vmem:[%s6 + $0x18] sm:$0xff]
        %1195 = vset.pattern.permute.xlu0 0
        %1196 = vperm.xlu0 %1195, %v1190
        %v1197 = vpop.permute.xlu0 %1196
        %1200 = vset.pattern.permute.xlu0 0
        %1201 = vperm.xlu0 %1200, %v1191
        %v1202 = vpop.permute.xlu0 %1201
        %1205 = vset.pattern.permute.xlu0 0
        %1206 = vperm.xlu0 %1205, %v1192
        %v1207 = vpop.permute.xlu0 %1206
        %1210 = vset.pattern.permute.xlu0 0
        %1211 = vperm.xlu0 %1210, %v1193
        %v1212 = vpop.permute.xlu0 %1211
        %v1214 = vadd.f32 %v1186, %v1197
        %v1215 = vadd.f32 %v1187, %v1202
        %v1216 = vadd.f32 %v1188, %v1207
        %v1217 = vadd.f32 %v1189, %v1212
        %v1218 = vmax.f32 %v1214, 0.0
        %v1219 = vmax.f32 %v1215, 0.0
        %v1220 = vmax.f32 %v1216, 0.0
        %v1221 = vmax.f32 %v1217, 0.0
        %v1222 = vld [vmem:[%s7] sm:$0xf]
        %v1223 = vpack.c.bf16 %v1219, %v1218
        %v1224 = vpack.c.bf16 %v1221, %v1220
        %v1225 = vld [vmem:[%s8] sm:$0xff]
        %1227 = vset.pattern.permute.xlu0 0
        %1228 = vperm.xlu0 %1227, %v1225
        %v1229 = vpop.permute.xlu0 %1228
        %vm1231 = vcmask 261120
        %v1233 = vsel %vm1231, %v1222, 0
        %1235 = vmatprep.subr.bf16.mxu0 0
        %1236 = vmatpush1.bf16.msra.mxu0 0
        %1237 = vmatprep.subr.bf16.mxu0 0
        %1238 = vmatpush1.bf16.msra.mxu0 0
        %1239 = vmatprep.subr.bf16.mxu0 0
        %1240 = vmatpush1.bf16.msra.mxu0 0
        %1241 = vmatprep.subr.bf16.mxu0 0
        %1242 = vmatpush1.bf16.msra.mxu0 0
        %1243 = vmatprep.subr.bf16.mxu0 0
        %1244 = vmatpush1.bf16.msra.mxu0 0
        %1245 = vmatprep.subr.bf16.mxu0 0
        %1246 = vmatpush1.bf16.msra.mxu0 0
        %1247 = vmatprep.subr.bf16.mxu0 0
        %1248 = vmatpush1.bf16.msra.mxu0 %v1224
        %1249 = vmatprep.subr.bf16.mxu0 0
        %1250 = vmatpush1.bf16.msra.mxu0 %v1223
        %1251 = vmatprep.subr.bf16.mxu0 0
        %1252 = vmatpush2.bf16.msra.mxu0 0
        %1253 = vmatprep.subr.bf16.mxu0 0
        %1254 = vmatpush2.bf16.msra.mxu0 0
        %1255 = vmatprep.subr.bf16.mxu0 0
        %1256 = vmatpush2.bf16.msra.mxu0 0
        %1257 = vmatprep.subr.bf16.mxu0 0
        %1258 = vmatpush2.bf16.msra.mxu0 0
        %1259 = vmatprep.subr.bf16.mxu0 0
        %1260 = vmatpush2.bf16.msra.mxu0 0
        %1261 = vmatprep.subr.bf16.mxu0 0
        %1262 = vmatpush2.bf16.msra.mxu0 0
        %1263 = vmatprep.subr.bf16.mxu0 0
        %1264 = vmatpush2.bf16.msra.mxu0 0
        %1265 = vmatprep.subr.bf16.mxu0 0
        %1266 = vmatpush2.bf16.msra.mxu0 0
        %1267 = vmatprep.mubr.bf16.mxu0 0
        %1268 = vmatmul.mubr.bf16.gmra.mxu0 %v1233
        %v1269 = vpop.f32.mrf.mxu0
        %v1270 = vadd.f32 %v1229, %v1269
        %v1271 = vpop.f32.mrf.mxu0
        %v1272 = vpop.f32.mrf.mxu0
        %v1273 = vpop.f32.mrf.mxu0
        %1274 = vdwg.mxu0
        %1275 = vst [vmem:[%s393] sm:$0xff] %v1270
        %s1276 = sand.u32 %s255, 1
        %s1277 = scalar_lea.sflag [#allocation3], %s1276
        %s1278 = sand.u32 %s255, 1
        %s1279 = smul.addr %s1278, 8
        %s1280 = scalar_lea.vmem [#allocation2], %s1279
        // Predicated region
        $region57: #{tpu_custom_call.1} parent=55 // pred_check
          %p1281 = pneg %p265
        $region58: #{tpu_custom_call.1} parent=55 // pred_check_branch
          %1283 = sbr.rel (%p1281) target = $region60
        $region59: #{tpu_custom_call.1} parent=55 // pred_region
          %s1285 = ssub.s32 128, 128
          %1286 = vsyncadd %s1277, %s1285
          %s1287 = smul.addr %s27, 2
          %s1288 = sadd.s32 %s28, %s1287
          %s1289 = smul.addr %s1288, 128
          %s1290 = scalar_lea.hbm %s9, %s1289
          %s1292 = sshll.u32 %s1280, 4
          %s1293 = int_to_ptr.vmem [resolvable:$true] %s1292
          %1295 = dma.vmem_to_hbm [thread:$0]  %s1293, 128, %s1290, %s1277
        $region60: #{tpu_custom_call.1} parent=55 // pred_fallthru
          _
      $region56: #{tpu_custom_call.1} parent=5 // pred_fallthru
        _
      %p1296 = scmp.le.s32.totalorder 2, %s18
      // Predicated region
      $region61: #{tpu_custom_call.1} parent=5 // pred_check
        %p1297 = pneg %p1296
      $region62: #{tpu_custom_call.1} parent=5 // pred_check_branch
        %1299 = sbr.rel (%p1297) target = $region64
      $region63: #{tpu_custom_call.1} parent=5 // pred_region
        %s1300 = ssub.s32 %s18, 2
        // Predicated region
        $region65: #{tpu_custom_call.1} parent=63 // pred_check
          %p1301 = pneg %p271
        $region66: #{tpu_custom_call.1} parent=63 // pred_check_branch
          %1303 = sbr.rel (%p1301) target = $region68
        $region67: #{tpu_custom_call.1} parent=63 // pred_region
          %s1304 = sand.u32 %s256, 1
          %s1305 = scalar_lea.sflag [#allocation3], %s1304
          %s1306 = sand.u32 %s256, 1
          %s1307 = smul.addr %s1306, 8
          %s1308 = scalar_lea.vmem [#allocation2], %s1307
          %1309 = dma.done %s1305, 128
        $region68: #{tpu_custom_call.1} parent=63 // pred_fallthru
          _
      $region64: #{tpu_custom_call.1} parent=5 // pred_fallthru
        _
    $region6: #{tpu_custom_call.1} parent=1 // loop_footer
      %s22 = sadd.s32 1, %s18
    $region7: #{tpu_custom_call.1} parent=1 // loop_footer_branch
      %17 = sbr.rel target = $region3
    $region8: #{tpu_custom_call.1} parent=1 // loop_exit
      _
    %1310 = vsyncpa [#allocation3], 1
    %s1311 = scalar_lea.sflag [#allocation3], 1
    %1312 = vsyncpa %s1311, 1

</llo_original>
